<compile_context>
chip_gen: v7x
topology: tpu7x:2x2x1
jax: 0.10.0
libtpu: 0.0.40
codegen_flags: <defaults>
</compile_context>

<pallas_src>
import math
from functools import partial

import jax
import jax.numpy as jnp
from jax.experimental import pallas as pl
from jax.experimental.pallas import tpu as pltpu


def _round_up(x, n):
    return ((x + n - 1) // n) * n


def _arc_margin_kernel(x_ref, w_ref, winv_ref, lab_ref, o_ref, *, s, cos_m, sin_m, th, mm, tc):
    """One class-tile of the ArcMarginProduct forward.

    x_ref:    (B, D)  bf16, rows pre-normalized to unit length (resident)
    w_ref:    (tc, D) bf16 class-weight tile for class block j (raw, unnormalized)
    winv_ref: (1, tc) f32 precomputed 1 / max(||w_c||, 1e-12) for this tile
    lab_ref:  (B, 1)  int32 target class per row (resident)
    o_ref:    (B, tc) f32 output logits tile
    """
    j = pl.program_id(0)

    # MXU: contract D of both operands directly (no materialized transpose),
    # bf16 inputs with f32 accumulation.
    raw = jax.lax.dot_general(
        x_ref[...],
        w_ref[...],
        dimension_numbers=(((1,), (1,)), ((), ())),
        preferred_element_type=jnp.float32,
    )  # (B, tc) f32

    # cosine = (x/||x||) . (w/||w||): x rows already unit-norm, scale columns
    # by the per-class inverse norm (B*tc multiplies instead of tc*D divides).
    cosine = raw * winv_ref[...]  # (B, tc) * (1, tc) broadcast

    # Margin math in f32 (v5e has no bf16 VPU/EUP path).
    sine = jnp.sqrt(jnp.clip(1.0 - cosine * cosine, 0.0, 1.0))
    phi = cosine * cos_m - sine * sin_m
    # easy_margin=False branch: where(cos > cos(pi-m), phi, cos - sin(pi-m)*m)
    phi = jnp.where(cosine > th, phi, cosine - mm)

    # one-hot(label) selection for this class tile.
    col = jax.lax.broadcasted_iota(jnp.int32, cosine.shape, 1) + j * tc
    one_hot = col == lab_ref[...]  # (B, tc) via broadcast against (B, 1)

    o_ref[...] = (jnp.where(one_hot, phi, cosine) * s).astype(o_ref.dtype)


def arc_margin_product(features, labels, weight, *, s=30.0, m=0.5, tc=512):
    """Pallas ArcMarginProduct: features (B, D), labels (B,), weight (C, D) -> (B, C)."""
    B, D = features.shape
    C, D2 = weight.shape
    assert D == D2

    # Class tile: lane-dense multiple of 128; pad C up to a tile multiple.
    tc = max(128, (min(tc, _round_up(C, 128)) // 128) * 128)
    C_pad = _round_up(C, tc)

    # --- one-time / per-forward parameter prep (cheap, fused XLA pass) ---
    # Pre-normalize the (B, D) features once instead of once per class tile.
    x32 = features.astype(jnp.float32)
    xn = x32 * jax.lax.rsqrt(jnp.maximum(jnp.sum(x32 * x32, axis=-1, keepdims=True), 1e-24))
    xn_bf16 = xn.astype(jnp.bfloat16)

    # bf16 weight stream + exact f32 inverse row norms (1/max(||w||, 1e-12)).
    w32 = weight.astype(jnp.float32)
    w_inv = jax.lax.rsqrt(jnp.maximum(jnp.sum(w32 * w32, axis=-1), 1e-24))  # (C,)
    w_bf16 = w32.astype(jnp.bfloat16)
    if C_pad != C:
        w_bf16 = jnp.pad(w_bf16, ((0, C_pad - C), (0, 0)))
        w_inv = jnp.pad(w_inv, (0, C_pad - C), constant_values=1.0)
    w_inv2d = w_inv.reshape(1, C_pad)

    labels2d = labels.astype(jnp.int32).reshape(B, 1)

    # Explicit VMEM budget: double-buffered weight tile + outputs + residents,
    # capped at 64 MiB so it also fits v7x's smaller VMEM.
    w_tile_bytes = tc * D * 2
    need = 4 * w_tile_bytes + 2 * (B * tc * 4) + B * D * 2 + 2 * tc * 4 + (8 << 20)
    vmem_limit = int(min(64 << 20, max(32 << 20, need)))

    kernel = partial(
        _arc_margin_kernel,
        s=s,
        cos_m=math.cos(m),
        sin_m=math.sin(m),
        th=math.cos(math.pi - m),
        mm=math.sin(math.pi - m) * m,
        tc=tc,
    )

    out = pl.pallas_call(
        kernel,
        out_shape=jax.ShapeDtypeStruct((B, C_pad), jnp.float32),
        grid_spec=pltpu.PrefetchScalarGridSpec(
            num_scalar_prefetch=0,
            grid=(C_pad // tc,),
            in_specs=[
                pl.BlockSpec((B, D), lambda j: (0, 0)),    # normalized features, resident
                pl.BlockSpec((tc, D), lambda j: (j, 0)),   # bf16 weight tile over classes
                pl.BlockSpec((1, tc), lambda j: (0, j)),   # per-class inverse norms
                pl.BlockSpec((B, 1), lambda j: (0, 0)),    # labels, resident
            ],
            out_specs=pl.BlockSpec((B, tc), lambda j: (0, j)),
        ),
        compiler_params=pltpu.CompilerParams(
            dimension_semantics=("parallel",),  # class-tile axis shards across TCs (v7x megacore)
            vmem_limit_bytes=vmem_limit,
        ),
    )(xn_bf16, w_bf16, w_inv2d, labels2d)

    return out[:, :C] if C_pad != C else out


@jax.jit
def model_forward(cls_hidden_state, labels, arc_weight):
    """Model.forward: bert CLS features -> ArcMarginProduct logits."""
    return arc_margin_product(cls_hidden_state, labels, arc_weight, s=30.0, m=0.5)


def _reference(features, labels, weight, s=30.0, m=0.5):
    """Mirror reference with the same bf16 weight/feature quantization as the kernel."""
    x32 = features.astype(jnp.float32)
    xn = x32 * jax.lax.rsqrt(jnp.maximum(jnp.sum(x32 * x32, axis=-1, keepdims=True), 1e-24))
    xn_q = xn.astype(jnp.bfloat16).astype(jnp.float32)
    w32 = weight.astype(jnp.float32)
    w_q = w32.astype(jnp.bfloat16).astype(jnp.float32)
    w_inv = jax.lax.rsqrt(jnp.maximum(jnp.sum(w32 * w32, axis=-1), 1e-24))
    cosine = (xn_q @ w_q.T) * w_inv[None, :]
    sine = jnp.sqrt(jnp.clip(1.0 - cosine * cosine, 0.0, 1.0))
    phi = cosine * math.cos(m) - sine * math.sin(m)
    phi = jnp.where(cosine > math.cos(math.pi - m), phi, cosine - math.sin(math.pi - m) * m)
    one_hot = jax.nn.one_hot(labels, weight.shape[0], dtype=cosine.dtype)
    return s * jnp.where(one_hot > 0, phi, cosine)


if __name__ == "__main__":
    # Small shapes consistent with the module (last_hidden_size=768, num_classes scaled down
    # and deliberately not a tile multiple to exercise the ragged-C padding path).
    B, D, C = 8, 768, 1000

    key = jax.random.PRNGKey(0)
    k_feat, k_w, k_lab = jax.random.split(key, 3)

    # Stand-in for bert CLS hidden states (see TODO above).
    cls_hidden = jax.random.normal(k_feat, (B, D), dtype=jnp.float32)

    # ArcMarginProduct weight: xavier_uniform over (num_classes, last_hidden_size).
    limit = math.sqrt(6.0 / (C + D))
    arc_weight = jax.random.uniform(k_w, (C, D), minval=-limit, maxval=limit, dtype=jnp.float32)

    labels = jax.random.randint(k_lab, (B,), 0, C, dtype=jnp.int32)

    out = model_forward(cls_hidden, labels, arc_weight)
    out = jax.block_until_ready(out)

    ref = _reference(cls_hidden, labels, arc_weight)
    assert out.shape == (B, C)
    assert jnp.allclose(out, ref, atol=1e-3, rtol=1e-3), "mismatch vs reference"

    print("KERNEL_OK")
</pallas_src>

<mosaic_0001>
module attributes {stable_mosaic.version = 11 : i64} {
  func.func @_arc_margin_kernel(%arg0: i32, %arg1: memref<8x768xbf16, #tpu.memory_space<vmem>>, %arg2: memref<512x768xbf16, #tpu.memory_space<vmem>>, %arg3: memref<1x512xf32, #tpu.memory_space<vmem>>, %arg4: memref<8x1xi32, #tpu.memory_space<vmem>>, %arg5: memref<8x512xf32, #tpu.memory_space<vmem>>) attributes {dimension_semantics = [#tpu.dimension_semantics<parallel>], iteration_bounds = array<i64: 2>, scalar_prefetch = 0 : i64, scratch_operands = 0 : i64, tpu.core_type = #tpu.core_type<tc>, window_params = [{pipeline_mode = #tpu.pipeline_mode<synchronous>, transform_indices = @transform_0, window_bounds = array<i64: 8, 768>}, {transform_indices = @transform_1, window_bounds = array<i64: 512, 768>}, {transform_indices = @transform_2, window_bounds = array<i64: 1, 512>}, {pipeline_mode = #tpu.pipeline_mode<synchronous>, transform_indices = @transform_3, window_bounds = array<i64: 8, 1>}, {transform_indices = @transform_4, window_bounds = array<i64: 8, 512>}]} {
    %c0 = arith.constant 0 : index
    %c0_0 = arith.constant 0 : index
    %0 = vector.load %arg1[%c0, %c0_0] : memref<8x768xbf16, #tpu.memory_space<vmem>>, vector<8x768xbf16>
    %c0_1 = arith.constant 0 : index
    %c0_2 = arith.constant 0 : index
    %1 = vector.load %arg2[%c0_1, %c0_2] : memref<512x768xbf16, #tpu.memory_space<vmem>>, vector<512x768xbf16>
    %cst = arith.constant dense<0.000000e+00> : vector<8x512xf32>
    %2 = tpu.matmul %0, %1, %cst {dimension_numbers = #tpu.dot_dimension_numbers<[1], [1], [0], [0], [0, 0, 1, 0], [], []>} : vector<8x768xbf16>, vector<512x768xbf16>, vector<8x512xf32> -> vector<8x512xf32>
    %c0_3 = arith.constant 0 : index
    %c0_4 = arith.constant 0 : index
    %3 = vector.load %arg3[%c0_3, %c0_4] : memref<1x512xf32, #tpu.memory_space<vmem>>, vector<1x512xf32>
    %4 = vector.broadcast %3 : vector<1x512xf32> to vector<8x512xf32>
    %5 = arith.mulf %2, %4 : vector<8x512xf32>
    %6 = arith.mulf %5, %5 : vector<8x512xf32>
    %cst_5 = arith.constant 1.000000e+00 : f32
    %7 = vector.broadcast %cst_5 : f32 to vector<8x512xf32>
    %8 = arith.subf %7, %6 : vector<8x512xf32>
    %cst_6 = arith.constant 0.000000e+00 : f32
    %cst_7 = arith.constant 1.000000e+00 : f32
    %9 = vector.broadcast %cst_6 : f32 to vector<8x512xf32>
    %10 = arith.maximumf %9, %8 : vector<8x512xf32>
    %11 = vector.broadcast %cst_7 : f32 to vector<8x512xf32>
    %12 = arith.minimumf %11, %10 : vector<8x512xf32>
    %13 = math.sqrt %12 : vector<8x512xf32>
    %cst_8 = arith.constant 0.87758255 : f32
    %14 = vector.broadcast %cst_8 : f32 to vector<8x512xf32>
    %15 = arith.mulf %5, %14 : vector<8x512xf32>
    %cst_9 = arith.constant 0.47942555 : f32
    %16 = vector.broadcast %cst_9 : f32 to vector<8x512xf32>
    %17 = arith.mulf %13, %16 : vector<8x512xf32>
    %18 = arith.subf %15, %17 : vector<8x512xf32>
    %cst_10 = arith.constant -0.87758255 : f32
    %19 = vector.broadcast %cst_10 : f32 to vector<8x512xf32>
    %20 = arith.cmpf ogt, %5, %19 : vector<8x512xf32>
    %cst_11 = arith.constant 0.239712775 : f32
    %21 = vector.broadcast %cst_11 : f32 to vector<8x512xf32>
    %22 = arith.subf %5, %21 : vector<8x512xf32>
    %23 = arith.select %20, %18, %22 : vector<8x512xi1>, vector<8x512xf32>
    %24 = tpu.iota {dimensions = array<i32: 1>} : vector<8x512xi32>
    %c512_i32 = arith.constant 512 : i32
    %25 = arith.muli %arg0, %c512_i32 : i32
    %26 = vector.broadcast %25 : i32 to vector<8x512xi32>
    %27 = arith.addi %24, %26 : vector<8x512xi32>
    %c0_12 = arith.constant 0 : index
    %c0_13 = arith.constant 0 : index
    %28 = vector.load %arg4[%c0_12, %c0_13] : memref<8x1xi32, #tpu.memory_space<vmem>>, vector<8x1xi32>
    %29 = vector.broadcast %28 : vector<8x1xi32> to vector<8x512xi32>
    %30 = arith.cmpi eq, %27, %29 : vector<8x512xi32>
    %31 = arith.select %30, %23, %5 : vector<8x512xi1>, vector<8x512xf32>
    %cst_14 = arith.constant 3.000000e+01 : f32
    %32 = vector.broadcast %cst_14 : f32 to vector<8x512xf32>
    %33 = arith.mulf %31, %32 : vector<8x512xf32>
    %c0_15 = arith.constant 0 : index
    %c0_16 = arith.constant 0 : index
    %34 = vector.load %arg5[%c0_15, %c0_16] : memref<8x512xf32, #tpu.memory_space<vmem>>, vector<8x512xf32>
    tpu.vector_store %arg5[%c0_15, %c0_16], %33 {strides = array<i32>} : memref<8x512xf32, #tpu.memory_space<vmem>>, vector<8x512xf32>,
    return
  }
  func.func @transform_0(%arg0: i32) -> (i32, i32) {
    %c0_i32 = arith.constant 0 : i32
    %c0_i32_0 = arith.constant 0 : i32
    %c0_i32_1 = arith.constant 0 : i32
    return %c0_i32, %c0_i32_0 : i32, i32
  }
  func.func @transform_1(%arg0: i32) -> (i32, i32) {
    %c0_i32 = arith.constant 0 : i32
    %c0_i32_0 = arith.constant 0 : i32
    return %arg0, %c0_i32 : i32, i32
  }
  func.func @transform_2(%arg0: i32) -> (i32, i32) {
    %c0_i32 = arith.constant 0 : i32
    %c0_i32_0 = arith.constant 0 : i32
    return %c0_i32, %arg0 : i32, i32
  }
  func.func @transform_3(%arg0: i32) -> (i32, i32) {
    %c0_i32 = arith.constant 0 : i32
    %c0_i32_0 = arith.constant 0 : i32
    %c0_i32_1 = arith.constant 0 : i32
    return %c0_i32, %c0_i32_0 : i32, i32
  }
  func.func @transform_4(%arg0: i32) -> (i32, i32) {
    %c0_i32 = arith.constant 0 : i32
    %c0_i32_0 = arith.constant 0 : i32
    return %c0_i32, %arg0 : i32, i32
  }
}

</mosaic_0001>

<llo_original>
// kernel: model_forward.1
$region0: #{model_forward.1}
  #allocation0 [shape = 'u32[]', space=smem, size = 0x4, offset = 0x4, fixed_abs, tag = 'smem constant byte address 0x4 - core index']
  #allocation1 [shape = 'u32[144,128]{1,0:T(1,128)}', space=vmem, size = 0x12000, scoped, tag = 'internal scratch']
  %s0 = inlined_call_operand.vmem [shape: bf16[8,768], index: 0, kind: input, shape index: {}]
  %s1 = inlined_call_operand.vmem [shape: bf16[1024,768], index: 1, kind: input, shape index: {}]
  %s2 = inlined_call_operand.vmem [shape: f32[1,1024], index: 2, kind: input, shape index: {}]
  %s3 = inlined_call_operand.vmem [shape: s32[8,1], index: 3, kind: input, shape index: {}]
  %s4 = inlined_call_operand.hbm [shape: f32[8,1024], index: 4, kind: output, shape index: {}]
  %s5 = sld [smem:[#allocation0]]
  $region49: #{model_forward.1} parent=0
    _
  %s7 = ssub.s32 1, %s5
  %s8 = scalar_select 0, %s7, %s5
  $region1: #{model_forward.1} parent=0
    #allocation2 [shape = 'u8[32768]{0}', space=vmem, size = 0x8000, scoped, tag = 'output window, operand 0']
    #allocation3 [shape = 's32[2]{0}', space=sflag, size = 0x8, scoped, tag = 'scoped memory for model_forward.1']
    %9 = vsyncpa [#allocation3], 0
    %s10 = scalar_lea.sflag [#allocation3], 1
    %11 = vsyncpa %s10, 0
    loop: start=0, step=1, limit=4
    $region2: #{model_forward.1} parent=1 // loop_pre_header
      _
    $region3: #{model_forward.1} parent=1 // loop_header
      %s13 = sphi 0, %s17
      %p14 = scmp.ge.s32.totalorder %s13, 4
      %s21 = sphi 0, %s21
      %s23 = sphi 0, %s21
      %s24 = sphi 0, %s23
      %s38 = sphi 0, %s24
      %s44 = sphi 0, %s46
      %s47 = sphi 0, %s44
      %s48 = sphi 0, %s47
      %s64 = sphi 0, %s48
      %s70 = sphi 0, %s72
      %s73 = sphi 0, %s70
      %s74 = sphi 0, %s73
      %s90 = sphi 0, %s74
      %s94 = sphi 0, %s94
      %s96 = sphi 0, %s94
      %s97 = sphi 0, %s96
      %s111 = sphi 0, %s97
      %s117 = sphi 0, %s119
      %s120 = sphi 0, %s117
      %s121 = sphi 0, %s120
      %s137 = sphi 0, %s121
    $region4: #{model_forward.1} parent=1 // loop_header_branch
      %16 = sbr.rel (%p14) target = $region8
    $region5: #{model_forward.1} parent=1 // loop_body
      %s18 = ssub.s32 %s13, 1
      %s19 = ssub.s32 %s13, 2
      %s20 = sadd.s32 %s13, 1
      %s22 = sadd.s32 %s21, 1
      %p25 = scmp.eq.s32.totalorder %s13, 1
      %p26 = scmp.ne.s32.totalorder %s21, %s23
      %p27 = scmp.eq.s32.totalorder %s13, 0
      %p28 = por %p26, %p27
      %p29 = scmp.ne.s32.totalorder %s21, %s23
      %p30 = scmp.eq.s32.totalorder %s18, 1
      %p31 = por %p29, %p30
      %p32 = scmp.ne.s32.totalorder %s23, %s24
      %p33 = scmp.eq.s32.totalorder %s18, 0
      %p34 = por %p32, %p33
      %p35 = scmp.ne.s32.totalorder %s23, %s24
      %p36 = scmp.eq.s32.totalorder %s19, 1
      %p37 = por %p35, %p36
      %p39 = scmp.ne.s32.totalorder %s24, %s38
      %p40 = scmp.eq.s32.totalorder %s19, 0
      %p41 = por %p39, %p40
      %s42 = ssub.s32 %s13, %s20
      %p43 = scmp.eq.s32.totalorder %s42, 0
      %s45 = sadd.s32 %s44, 1
      %s46 = scalar_select %p43, %s44, %s45
      %p49 = pneg %p43
      %p50 = scmp.eq.s32.totalorder %s13, 1
      %p51 = por %p49, %p50
      %p52 = scmp.ne.s32.totalorder %s44, %s47
      %p53 = scmp.eq.s32.totalorder %s13, 0
      %p54 = por %p52, %p53
      %p55 = scmp.ne.s32.totalorder %s44, %s47
      %p56 = scmp.eq.s32.totalorder %s18, 1
      %p57 = por %p55, %p56
      %p58 = scmp.ne.s32.totalorder %s47, %s48
      %p59 = scmp.eq.s32.totalorder %s18, 0
      %p60 = por %p58, %p59
      %p61 = scmp.ne.s32.totalorder %s47, %s48
      %p62 = scmp.eq.s32.totalorder %s19, 1
      %p63 = por %p61, %p62
      %p65 = scmp.ne.s32.totalorder %s48, %s64
      %p66 = scmp.eq.s32.totalorder %s19, 0
      %p67 = por %p65, %p66
      %s68 = ssub.s32 %s13, %s20
      %p69 = scmp.eq.s32.totalorder %s68, 0
      %s71 = sadd.s32 %s70, 1
      %s72 = scalar_select %p69, %s70, %s71
      %p75 = pneg %p69
      %p76 = scmp.eq.s32.totalorder %s13, 1
      %p77 = por %p75, %p76
      %p78 = scmp.ne.s32.totalorder %s70, %s73
      %p79 = scmp.eq.s32.totalorder %s13, 0
      %p80 = por %p78, %p79
      %p81 = scmp.ne.s32.totalorder %s70, %s73
      %p82 = scmp.eq.s32.totalorder %s18, 1
      %p83 = por %p81, %p82
      %p84 = scmp.ne.s32.totalorder %s73, %s74
      %p85 = scmp.eq.s32.totalorder %s18, 0
      %p86 = por %p84, %p85
      %p87 = scmp.ne.s32.totalorder %s73, %s74
      %p88 = scmp.eq.s32.totalorder %s19, 1
      %p89 = por %p87, %p88
      %p91 = scmp.ne.s32.totalorder %s74, %s90
      %p92 = scmp.eq.s32.totalorder %s19, 0
      %p93 = por %p91, %p92
      %s95 = sadd.s32 %s94, 1
      %p98 = scmp.eq.s32.totalorder %s13, 1
      %p99 = scmp.ne.s32.totalorder %s94, %s96
      %p100 = scmp.eq.s32.totalorder %s13, 0
      %p101 = por %p99, %p100
      %p102 = scmp.ne.s32.totalorder %s94, %s96
      %p103 = scmp.eq.s32.totalorder %s18, 1
      %p104 = por %p102, %p103
      %p105 = scmp.ne.s32.totalorder %s96, %s97
      %p106 = scmp.eq.s32.totalorder %s18, 0
      %p107 = por %p105, %p106
      %p108 = scmp.ne.s32.totalorder %s96, %s97
      %p109 = scmp.eq.s32.totalorder %s19, 1
      %p110 = por %p108, %p109
      %p112 = scmp.ne.s32.totalorder %s97, %s111
      %p113 = scmp.eq.s32.totalorder %s19, 0
      %p114 = por %p112, %p113
      %s115 = ssub.s32 %s13, %s20
      %p116 = scmp.eq.s32.totalorder %s115, 0
      %s118 = sadd.s32 %s117, 1
      %s119 = scalar_select %p116, %s117, %s118
      %p122 = pneg %p116
      %p123 = scmp.eq.s32.totalorder %s13, 1
      %p124 = por %p122, %p123
      %p125 = scmp.ne.s32.totalorder %s117, %s120
      %p126 = scmp.eq.s32.totalorder %s13, 0
      %p127 = por %p125, %p126
      %p128 = scmp.ne.s32.totalorder %s117, %s120
      %p129 = scmp.eq.s32.totalorder %s18, 1
      %p130 = por %p128, %p129
      %p131 = scmp.ne.s32.totalorder %s120, %s121
      %p132 = scmp.eq.s32.totalorder %s18, 0
      %p133 = por %p131, %p132
      %p134 = scmp.ne.s32.totalorder %s120, %s121
      %p135 = scmp.eq.s32.totalorder %s19, 1
      %p136 = por %p134, %p135
      %p138 = scmp.ne.s32.totalorder %s121, %s137
      %p139 = scmp.eq.s32.totalorder %s19, 0
      %p140 = por %p138, %p139
      %p141 = scmp.le.s32.totalorder 1, %s13
      %p142 = scmp.lt.s32.totalorder %s13, 3
      %p143 = pnand %p141, %p142
      %p144 = pneg %p143
      // Predicated region
      $region9: #{model_forward.1} parent=5 // pred_check
        _
      $region10: #{model_forward.1} parent=5 // pred_check_branch
        %146 = sbr.rel (%p143) target = $region12
      $region11: #{model_forward.1} parent=5 // pred_region
        %s147 = ssub.s32 %s13, 1
        // Predicated region
        $region13: #{model_forward.1} parent=11 // pred_check
          %p148 = pneg %p34
        $region14: #{model_forward.1} parent=11 // pred_check_branch
          %150 = sbr.rel (%p148) target = $region16
        $region15: #{model_forward.1} parent=11 // pred_region
          _
        $region16: #{model_forward.1} parent=11 // pred_fallthru
          _
        // Predicated region
        $region17: #{model_forward.1} parent=11 // pred_check
          %p151 = pneg %p107
        $region18: #{model_forward.1} parent=11 // pred_check_branch
          %153 = sbr.rel (%p151) target = $region20
        $region19: #{model_forward.1} parent=11 // pred_region
          _
        $region20: #{model_forward.1} parent=11 // pred_fallthru
          _
      $region12: #{model_forward.1} parent=5 // pred_fallthru
        _
      %p154 = scmp.lt.s32.totalorder %s13, 2
      // Predicated region
      $region21: #{model_forward.1} parent=5 // pred_check
        %p155 = pneg %p154
      $region22: #{model_forward.1} parent=5 // pred_check_branch
        %157 = sbr.rel (%p155) target = $region24
      $region23: #{model_forward.1} parent=5 // pred_region
        // Predicated region
        $region25: #{model_forward.1} parent=23 // pred_check
          %p158 = pneg %p54
        $region26: #{model_forward.1} parent=23 // pred_check_branch
          %160 = sbr.rel (%p158) target = $region28
        $region27: #{model_forward.1} parent=23 // pred_region
          %s161 = smul.u32 64, %s13
          %p162 = scmp.lt.s32.totalorder %s161, 127
          %s163 = scalar_select %p162, %s161, 127
          %s164 = smul.addr %s163, 6
          %s165 = smul.addr %s164, 4
          %s166 = scalar_lea.vmem %s1, %s165
          %s167 = smul.u32 64, %s13
        $region28: #{model_forward.1} parent=23 // pred_fallthru
          _
        // Predicated region
        $region29: #{model_forward.1} parent=23 // pred_check
          %p168 = pneg %p80
        $region30: #{model_forward.1} parent=23 // pred_check_branch
          %170 = sbr.rel (%p168) target = $region32
        $region31: #{model_forward.1} parent=23 // pred_region
          %s171 = smul.u32 4, %s13
          %p172 = scmp.lt.s32.totalorder %s171, 7
          %s173 = scalar_select %p172, %s171, 7
          %s174 = scalar_lea.vmem %s2, %s173
          %s175 = smul.u32 4, %s13
        $region32: #{model_forward.1} parent=23 // pred_fallthru
          _
      $region24: #{model_forward.1} parent=5 // pred_fallthru
        _
      %p176 = scmp.le.s32.totalorder 1, %s13
      %p177 = scmp.lt.s32.totalorder %s13, 3
      %p178 = pnand %p176, %p177
      %p179 = pneg %p178
      // Predicated region
      $region33: #{model_forward.1} parent=5 // pred_check
        _
      $region34: #{model_forward.1} parent=5 // pred_check_branch
        %181 = sbr.rel (%p178) target = $region36
      $region35: #{model_forward.1} parent=5 // pred_region
        %s182 = ssub.s32 %s13, 1
        %p183 = pneg %p34
        %p184 = pneg %p31
        %s185 = smul.u32 64, %s18
        %p186 = scmp.lt.s32.totalorder %s185, 127
        %s187 = scalar_select %p186, %s185, 127
        %s188 = smul.addr %s187, 6
        %s189 = smul.addr %s188, 4
        %s190 = scalar_lea.vmem %s1, %s189
        %p191 = pneg %p60
        %p192 = pneg %p57
        %s193 = smul.u32 4, %s18
        %p194 = scmp.lt.s32.totalorder %s193, 7
        %s195 = scalar_select %p194, %s193, 7
        %s196 = scalar_lea.vmem %s2, %s195
        %p197 = pneg %p86
        %p198 = pneg %p83
        %p199 = pneg %p107
        %p200 = pneg %p104
        %p201 = pneg %p133
        %p202 = pneg %p130
        %s203 = sand.u32 %s120, 1
        %s204 = scalar_lea.sflag [#allocation3], %s203
        %s205 = sand.u32 %s120, 1
        %s206 = smul.addr %s205, 32
        %s207 = scalar_lea.vmem [#allocation2], %s206
        %s208 = smul.u32 64, %s18
        %p209 = scmp.lt.s32.totalorder %s208, 127
        %s210 = scalar_select %p209, %s208, 127
        %s211 = smul.addr %s210, 6
        %s212 = smul.addr %s211, 4
        %s213 = scalar_lea.vmem %s1, %s212
        %s214 = smul.u32 64, %s18
        %s215 = smul.u32 4, %s18
        %p216 = scmp.lt.s32.totalorder %s215, 7
        %s217 = scalar_select %p216, %s215, 7
        %s218 = scalar_lea.vmem %s2, %s217
        %s219 = smul.u32 4, %s18
        %s220 = smul.u32 4, %s18
        %v221 = vld [vmem:[%s0] sm:$0xff]
        %v222 = vld [vmem:[%s0 + $0x8] sm:$0xff]
        %v223 = vld [vmem:[%s0 + $0x10] sm:$0xff]
        %v224 = vld [vmem:[%s213] sm:$0xff]
        %v225 = vld [vmem:[%s213 + $0x8] sm:$0xff]
        %v226 = vld [vmem:[%s213 + $0x10] sm:$0xff]
        %v227 = vld [vmem:[%s213 + $0x18] sm:$0xff]
        %v228 = vld [vmem:[%s213 + $0x20] sm:$0xff]
        %v229 = vld [vmem:[%s213 + $0x28] sm:$0xff]
        %v230 = vld [vmem:[%s213 + $0x30] sm:$0xff]
        %v231 = vld [vmem:[%s213 + $0x38] sm:$0xff]
        %v232 = vld [vmem:[%s213 + $0x40] sm:$0xff]
        %v233 = vld [vmem:[%s213 + $0x48] sm:$0xff]
        %v234 = vld [vmem:[%s213 + $0x50] sm:$0xff]
        %v235 = vld [vmem:[%s213 + $0x58] sm:$0xff]
        %v236 = vld [vmem:[%s213 + $0x60] sm:$0xff]
        %v237 = vld [vmem:[%s213 + $0x68] sm:$0xff]
        %v238 = vld [vmem:[%s213 + $0x70] sm:$0xff]
        %v239 = vld [vmem:[%s213 + $0x78] sm:$0xff]
        %v240 = vld [vmem:[%s213 + $0x80] sm:$0xff]
        %v241 = vld [vmem:[%s213 + $0x88] sm:$0xff]
        %v242 = vld [vmem:[%s213 + $0x90] sm:$0xff]
        %v243 = vld [vmem:[%s213 + $0x98] sm:$0xff]
        %v244 = vld [vmem:[%s213 + $0xa0] sm:$0xff]
        %v245 = vld [vmem:[%s213 + $0xa8] sm:$0xff]
        %v246 = vld [vmem:[%s213 + $0xb0] sm:$0xff]
        %v247 = vld [vmem:[%s213 + $0xb8] sm:$0xff]
        %v248 = vld [vmem:[%s213 + $0xc0] sm:$0xff]
        %v249 = vld [vmem:[%s213 + $0xc8] sm:$0xff]
        %v250 = vld [vmem:[%s213 + $0xd0] sm:$0xff]
        %v251 = vld [vmem:[%s213 + $0xd8] sm:$0xff]
        %v252 = vld [vmem:[%s213 + $0xe0] sm:$0xff]
        %v253 = vld [vmem:[%s213 + $0xe8] sm:$0xff]
        %v254 = vld [vmem:[%s213 + $0xf0] sm:$0xff]
        %v255 = vld [vmem:[%s213 + $0xf8] sm:$0xff]
        %v256 = vld [vmem:[%s213 + $0x100] sm:$0xff]
        %v257 = vld [vmem:[%s213 + $0x108] sm:$0xff]
        %v258 = vld [vmem:[%s213 + $0x110] sm:$0xff]
        %v259 = vld [vmem:[%s213 + $0x118] sm:$0xff]
        %v260 = vld [vmem:[%s213 + $0x120] sm:$0xff]
        %v261 = vld [vmem:[%s213 + $0x128] sm:$0xff]
        %v262 = vld [vmem:[%s213 + $0x130] sm:$0xff]
        %v263 = vld [vmem:[%s213 + $0x138] sm:$0xff]
        %v264 = vld [vmem:[%s213 + $0x140] sm:$0xff]
        %v265 = vld [vmem:[%s213 + $0x148] sm:$0xff]
        %v266 = vld [vmem:[%s213 + $0x150] sm:$0xff]
        %v267 = vld [vmem:[%s213 + $0x158] sm:$0xff]
        %v268 = vld [vmem:[%s213 + $0x160] sm:$0xff]
        %v269 = vld [vmem:[%s213 + $0x168] sm:$0xff]
        %v270 = vld [vmem:[%s213 + $0x170] sm:$0xff]
        %v271 = vld [vmem:[%s213 + $0x178] sm:$0xff]
        %v272 = vld [vmem:[%s213 + $0x180] sm:$0xff]
        %v273 = vld [vmem:[%s213 + $0x188] sm:$0xff]
        %v274 = vld [vmem:[%s213 + $0x190] sm:$0xff]
        %v275 = vld [vmem:[%s213 + $0x198] sm:$0xff]
        %v276 = vld [vmem:[%s213 + $0x1a0] sm:$0xff]
        %v277 = vld [vmem:[%s213 + $0x1a8] sm:$0xff]
        %v278 = vld [vmem:[%s213 + $0x1b0] sm:$0xff]
        %v279 = vld [vmem:[%s213 + $0x1b8] sm:$0xff]
        %v280 = vld [vmem:[%s213 + $0x1c0] sm:$0xff]
        %v281 = vld [vmem:[%s213 + $0x1c8] sm:$0xff]
        %v282 = vld [vmem:[%s213 + $0x1d0] sm:$0xff]
        %v283 = vld [vmem:[%s213 + $0x1d8] sm:$0xff]
        %v284 = vld [vmem:[%s213 + $0x1e0] sm:$0xff]
        %v285 = vld [vmem:[%s213 + $0x1e8] sm:$0xff]
        %v286 = vld [vmem:[%s213 + $0x1f0] sm:$0xff]
        %v287 = vld [vmem:[%s213 + $0x1f8] sm:$0xff]
        %v288 = vld [vmem:[%s213 + $0x200] sm:$0xff]
        %v289 = vld [vmem:[%s213 + $0x208] sm:$0xff]
        %v290 = vld [vmem:[%s213 + $0x210] sm:$0xff]
        %v291 = vld [vmem:[%s213 + $0x218] sm:$0xff]
        %v292 = vld [vmem:[%s213 + $0x220] sm:$0xff]
        %v293 = vld [vmem:[%s213 + $0x228] sm:$0xff]
        %v294 = vld [vmem:[%s213 + $0x230] sm:$0xff]
        %v295 = vld [vmem:[%s213 + $0x238] sm:$0xff]
        %v296 = vld [vmem:[%s213 + $0x240] sm:$0xff]
        %v297 = vld [vmem:[%s213 + $0x248] sm:$0xff]
        %v298 = vld [vmem:[%s213 + $0x250] sm:$0xff]
        %v299 = vld [vmem:[%s213 + $0x258] sm:$0xff]
        %v300 = vld [vmem:[%s213 + $0x260] sm:$0xff]
        %v301 = vld [vmem:[%s213 + $0x268] sm:$0xff]
        %v302 = vld [vmem:[%s213 + $0x270] sm:$0xff]
        %v303 = vld [vmem:[%s213 + $0x278] sm:$0xff]
        %v304 = vld [vmem:[%s213 + $0x280] sm:$0xff]
        %v305 = vld [vmem:[%s213 + $0x288] sm:$0xff]
        %v306 = vld [vmem:[%s213 + $0x290] sm:$0xff]
        %v307 = vld [vmem:[%s213 + $0x298] sm:$0xff]
        %v308 = vld [vmem:[%s213 + $0x2a0] sm:$0xff]
        %v309 = vld [vmem:[%s213 + $0x2a8] sm:$0xff]
        %v310 = vld [vmem:[%s213 + $0x2b0] sm:$0xff]
        %v311 = vld [vmem:[%s213 + $0x2b8] sm:$0xff]
        %v312 = vld [vmem:[%s213 + $0x2c0] sm:$0xff]
        %v313 = vld [vmem:[%s213 + $0x2c8] sm:$0xff]
        %v314 = vld [vmem:[%s213 + $0x2d0] sm:$0xff]
        %v315 = vld [vmem:[%s213 + $0x2d8] sm:$0xff]
        %v316 = vld [vmem:[%s213 + $0x2e0] sm:$0xff]
        %v317 = vld [vmem:[%s213 + $0x2e8] sm:$0xff]
        %v318 = vld [vmem:[%s213 + $0x2f0] sm:$0xff]
        %v319 = vld [vmem:[%s213 + $0x2f8] sm:$0xff]
        %v320 = vld [vmem:[%s213 + $0x300] sm:$0xff]
        %v321 = vld [vmem:[%s213 + $0x308] sm:$0xff]
        %v322 = vld [vmem:[%s213 + $0x310] sm:$0xff]
        %v323 = vld [vmem:[%s213 + $0x318] sm:$0xff]
        %v324 = vld [vmem:[%s213 + $0x320] sm:$0xff]
        %v325 = vld [vmem:[%s213 + $0x328] sm:$0xff]
        %v326 = vld [vmem:[%s213 + $0x330] sm:$0xff]
        %v327 = vld [vmem:[%s213 + $0x338] sm:$0xff]
        %v328 = vld [vmem:[%s213 + $0x340] sm:$0xff]
        %v329 = vld [vmem:[%s213 + $0x348] sm:$0xff]
        %v330 = vld [vmem:[%s213 + $0x350] sm:$0xff]
        %v331 = vld [vmem:[%s213 + $0x358] sm:$0xff]
        %v332 = vld [vmem:[%s213 + $0x360] sm:$0xff]
        %v333 = vld [vmem:[%s213 + $0x368] sm:$0xff]
        %v334 = vld [vmem:[%s213 + $0x370] sm:$0xff]
        %v335 = vld [vmem:[%s213 + $0x378] sm:$0xff]
        %v336 = vld [vmem:[%s213 + $0x380] sm:$0xff]
        %v337 = vld [vmem:[%s213 + $0x388] sm:$0xff]
        %v338 = vld [vmem:[%s213 + $0x390] sm:$0xff]
        %v339 = vld [vmem:[%s213 + $0x398] sm:$0xff]
        %v340 = vld [vmem:[%s213 + $0x3a0] sm:$0xff]
        %v341 = vld [vmem:[%s213 + $0x3a8] sm:$0xff]
        %v342 = vld [vmem:[%s213 + $0x3b0] sm:$0xff]
        %v343 = vld [vmem:[%s213 + $0x3b8] sm:$0xff]
        %v344 = vld [vmem:[%s213 + $0x3c0] sm:$0xff]
        %v345 = vld [vmem:[%s213 + $0x3c8] sm:$0xff]
        %v346 = vld [vmem:[%s213 + $0x3d0] sm:$0xff]
        %v347 = vld [vmem:[%s213 + $0x3d8] sm:$0xff]
        %v348 = vld [vmem:[%s213 + $0x3e0] sm:$0xff]
        %v349 = vld [vmem:[%s213 + $0x3e8] sm:$0xff]
        %v350 = vld [vmem:[%s213 + $0x3f0] sm:$0xff]
        %v351 = vld [vmem:[%s213 + $0x3f8] sm:$0xff]
        %v352 = vld [vmem:[%s213 + $0x400] sm:$0xff]
        %v353 = vld [vmem:[%s213 + $0x408] sm:$0xff]
        %v354 = vld [vmem:[%s213 + $0x410] sm:$0xff]
        %v355 = vld [vmem:[%s213 + $0x418] sm:$0xff]
        %v356 = vld [vmem:[%s213 + $0x420] sm:$0xff]
        %v357 = vld [vmem:[%s213 + $0x428] sm:$0xff]
        %v358 = vld [vmem:[%s213 + $0x430] sm:$0xff]
        %v359 = vld [vmem:[%s213 + $0x438] sm:$0xff]
        %v360 = vld [vmem:[%s213 + $0x440] sm:$0xff]
        %v361 = vld [vmem:[%s213 + $0x448] sm:$0xff]
        %v362 = vld [vmem:[%s213 + $0x450] sm:$0xff]
        %v363 = vld [vmem:[%s213 + $0x458] sm:$0xff]
        %v364 = vld [vmem:[%s213 + $0x460] sm:$0xff]
        %v365 = vld [vmem:[%s213 + $0x468] sm:$0xff]
        %v366 = vld [vmem:[%s213 + $0x470] sm:$0xff]
        %v367 = vld [vmem:[%s213 + $0x478] sm:$0xff]
        %v368 = vld [vmem:[%s213 + $0x480] sm:$0xff]
        %v369 = vld [vmem:[%s213 + $0x488] sm:$0xff]
        %v370 = vld [vmem:[%s213 + $0x490] sm:$0xff]
        %v371 = vld [vmem:[%s213 + $0x498] sm:$0xff]
        %v372 = vld [vmem:[%s213 + $0x4a0] sm:$0xff]
        %v373 = vld [vmem:[%s213 + $0x4a8] sm:$0xff]
        %v374 = vld [vmem:[%s213 + $0x4b0] sm:$0xff]
        %v375 = vld [vmem:[%s213 + $0x4b8] sm:$0xff]
        %v376 = vld [vmem:[%s213 + $0x4c0] sm:$0xff]
        %v377 = vld [vmem:[%s213 + $0x4c8] sm:$0xff]
        %v378 = vld [vmem:[%s213 + $0x4d0] sm:$0xff]
        %v379 = vld [vmem:[%s213 + $0x4d8] sm:$0xff]
        %v380 = vld [vmem:[%s213 + $0x4e0] sm:$0xff]
        %v381 = vld [vmem:[%s213 + $0x4e8] sm:$0xff]
        %v382 = vld [vmem:[%s213 + $0x4f0] sm:$0xff]
        %v383 = vld [vmem:[%s213 + $0x4f8] sm:$0xff]
        %v384 = vld [vmem:[%s213 + $0x500] sm:$0xff]
        %v385 = vld [vmem:[%s213 + $0x508] sm:$0xff]
        %v386 = vld [vmem:[%s213 + $0x510] sm:$0xff]
        %v387 = vld [vmem:[%s213 + $0x518] sm:$0xff]
        %v388 = vld [vmem:[%s213 + $0x520] sm:$0xff]
        %v389 = vld [vmem:[%s213 + $0x528] sm:$0xff]
        %v390 = vld [vmem:[%s213 + $0x530] sm:$0xff]
        %v391 = vld [vmem:[%s213 + $0x538] sm:$0xff]
        %v392 = vld [vmem:[%s213 + $0x540] sm:$0xff]
        %v393 = vld [vmem:[%s213 + $0x548] sm:$0xff]
        %v394 = vld [vmem:[%s213 + $0x550] sm:$0xff]
        %v395 = vld [vmem:[%s213 + $0x558] sm:$0xff]
        %v396 = vld [vmem:[%s213 + $0x560] sm:$0xff]
        %v397 = vld [vmem:[%s213 + $0x568] sm:$0xff]
        %v398 = vld [vmem:[%s213 + $0x570] sm:$0xff]
        %v399 = vld [vmem:[%s213 + $0x578] sm:$0xff]
        %v400 = vld [vmem:[%s213 + $0x580] sm:$0xff]
        %v401 = vld [vmem:[%s213 + $0x588] sm:$0xff]
        %v402 = vld [vmem:[%s213 + $0x590] sm:$0xff]
        %v403 = vld [vmem:[%s213 + $0x598] sm:$0xff]
        %v404 = vld [vmem:[%s213 + $0x5a0] sm:$0xff]
        %v405 = vld [vmem:[%s213 + $0x5a8] sm:$0xff]
        %v406 = vld [vmem:[%s213 + $0x5b0] sm:$0xff]
        %v407 = vld [vmem:[%s213 + $0x5b8] sm:$0xff]
        %v408 = vld [vmem:[%s213 + $0x5c0] sm:$0xff]
        %v409 = vld [vmem:[%s213 + $0x5c8] sm:$0xff]
        %v410 = vld [vmem:[%s213 + $0x5d0] sm:$0xff]
        %v411 = vld [vmem:[%s213 + $0x5d8] sm:$0xff]
        %v412 = vld [vmem:[%s213 + $0x5e0] sm:$0xff]
        %v413 = vld [vmem:[%s213 + $0x5e8] sm:$0xff]
        %v414 = vld [vmem:[%s213 + $0x5f0] sm:$0xff]
        %v415 = vld [vmem:[%s213 + $0x5f8] sm:$0xff]
        %v419 = vunpack.c.l.b16 %v221
        %v420 = vunpack.c.h.b16 %v221
        %v421 = vunpack.c.l.b16 %v222
        %v422 = vunpack.c.h.b16 %v222
        %v423 = vunpack.c.l.b16 %v223
        %v424 = vunpack.c.h.b16 %v223
        %v425 = vpack.c.b16 %v419, %v419
        %v426 = vpack.c.b16 %v420, %v420
        %v427 = vpack.c.b16 %v421, %v421
        %v428 = vpack.c.b16 %v422, %v422
        %v429 = vpack.c.b16 %v423, %v423
        %v430 = vpack.c.b16 %v424, %v424
        %v629 = vunpack.c.l.b16 %v224
        %v630 = vunpack.c.h.b16 %v224
        %v631 = vunpack.c.l.b16 %v225
        %v632 = vunpack.c.h.b16 %v225
        %v633 = vunpack.c.l.b16 %v226
        %v634 = vunpack.c.h.b16 %v226
        %v635 = vunpack.c.l.b16 %v227
        %v636 = vunpack.c.h.b16 %v227
        %v637 = vunpack.c.l.b16 %v228
        %v638 = vunpack.c.h.b16 %v228
        %v639 = vunpack.c.l.b16 %v229
        %v640 = vunpack.c.h.b16 %v229
        %v641 = vunpack.c.l.b16 %v230
        %v642 = vunpack.c.h.b16 %v230
        %v643 = vunpack.c.l.b16 %v231
        %v644 = vunpack.c.h.b16 %v231
        %v645 = vunpack.c.l.b16 %v232
        %v646 = vunpack.c.h.b16 %v232
        %v647 = vunpack.c.l.b16 %v233
        %v648 = vunpack.c.h.b16 %v233
        %v649 = vunpack.c.l.b16 %v234
        %v650 = vunpack.c.h.b16 %v234
        %v651 = vunpack.c.l.b16 %v235
        %v652 = vunpack.c.h.b16 %v235
        %v653 = vunpack.c.l.b16 %v236
        %v654 = vunpack.c.h.b16 %v236
        %v655 = vunpack.c.l.b16 %v237
        %v656 = vunpack.c.h.b16 %v237
        %v657 = vunpack.c.l.b16 %v238
        %v658 = vunpack.c.h.b16 %v238
        %v659 = vunpack.c.l.b16 %v239
        %v660 = vunpack.c.h.b16 %v239
        %v661 = vunpack.c.l.b16 %v240
        %v662 = vunpack.c.h.b16 %v240
        %v663 = vunpack.c.l.b16 %v241
        %v664 = vunpack.c.h.b16 %v241
        %v665 = vunpack.c.l.b16 %v242
        %v666 = vunpack.c.h.b16 %v242
        %v667 = vunpack.c.l.b16 %v243
        %v668 = vunpack.c.h.b16 %v243
        %v669 = vunpack.c.l.b16 %v244
        %v670 = vunpack.c.h.b16 %v244
        %v671 = vunpack.c.l.b16 %v245
        %v672 = vunpack.c.h.b16 %v245
        %v673 = vunpack.c.l.b16 %v246
        %v674 = vunpack.c.h.b16 %v246
        %v675 = vunpack.c.l.b16 %v247
        %v676 = vunpack.c.h.b16 %v247
        %v677 = vunpack.c.l.b16 %v248
        %v678 = vunpack.c.h.b16 %v248
        %v679 = vunpack.c.l.b16 %v249
        %v680 = vunpack.c.h.b16 %v249
        %v681 = vunpack.c.l.b16 %v250
        %v682 = vunpack.c.h.b16 %v250
        %v683 = vunpack.c.l.b16 %v251
        %v684 = vunpack.c.h.b16 %v251
        %v685 = vunpack.c.l.b16 %v252
        %v686 = vunpack.c.h.b16 %v252
        %v687 = vunpack.c.l.b16 %v253
        %v688 = vunpack.c.h.b16 %v253
        %v689 = vunpack.c.l.b16 %v254
        %v690 = vunpack.c.h.b16 %v254
        %v691 = vunpack.c.l.b16 %v255
        %v692 = vunpack.c.h.b16 %v255
        %v693 = vunpack.c.l.b16 %v256
        %v694 = vunpack.c.h.b16 %v256
        %v695 = vunpack.c.l.b16 %v257
        %v696 = vunpack.c.h.b16 %v257
        %v697 = vunpack.c.l.b16 %v258
        %v698 = vunpack.c.h.b16 %v258
        %v699 = vunpack.c.l.b16 %v259
        %v700 = vunpack.c.h.b16 %v259
        %v701 = vunpack.c.l.b16 %v260
        %v702 = vunpack.c.h.b16 %v260
        %v703 = vunpack.c.l.b16 %v261
        %v704 = vunpack.c.h.b16 %v261
        %v705 = vunpack.c.l.b16 %v262
        %v706 = vunpack.c.h.b16 %v262
        %v707 = vunpack.c.l.b16 %v263
        %v708 = vunpack.c.h.b16 %v263
        %v709 = vunpack.c.l.b16 %v264
        %v710 = vunpack.c.h.b16 %v264
        %v711 = vunpack.c.l.b16 %v265
        %v712 = vunpack.c.h.b16 %v265
        %v713 = vunpack.c.l.b16 %v266
        %v714 = vunpack.c.h.b16 %v266
        %v715 = vunpack.c.l.b16 %v267
        %v716 = vunpack.c.h.b16 %v267
        %v717 = vunpack.c.l.b16 %v268
        %v718 = vunpack.c.h.b16 %v268
        %v719 = vunpack.c.l.b16 %v269
        %v720 = vunpack.c.h.b16 %v269
        %v721 = vunpack.c.l.b16 %v270
        %v722 = vunpack.c.h.b16 %v270
        %v723 = vunpack.c.l.b16 %v271
        %v724 = vunpack.c.h.b16 %v271
        %v725 = vunpack.c.l.b16 %v272
        %v726 = vunpack.c.h.b16 %v272
        %v727 = vunpack.c.l.b16 %v273
        %v728 = vunpack.c.h.b16 %v273
        %v729 = vunpack.c.l.b16 %v274
        %v730 = vunpack.c.h.b16 %v274
        %v731 = vunpack.c.l.b16 %v275
        %v732 = vunpack.c.h.b16 %v275
        %v733 = vunpack.c.l.b16 %v276
        %v734 = vunpack.c.h.b16 %v276
        %v735 = vunpack.c.l.b16 %v277
        %v736 = vunpack.c.h.b16 %v277
        %v737 = vunpack.c.l.b16 %v278
        %v738 = vunpack.c.h.b16 %v278
        %v739 = vunpack.c.l.b16 %v279
        %v740 = vunpack.c.h.b16 %v279
        %v741 = vunpack.c.l.b16 %v280
        %v742 = vunpack.c.h.b16 %v280
        %v743 = vunpack.c.l.b16 %v281
        %v744 = vunpack.c.h.b16 %v281
        %v745 = vunpack.c.l.b16 %v282
        %v746 = vunpack.c.h.b16 %v282
        %v747 = vunpack.c.l.b16 %v283
        %v748 = vunpack.c.h.b16 %v283
        %v749 = vunpack.c.l.b16 %v284
        %v750 = vunpack.c.h.b16 %v284
        %v751 = vunpack.c.l.b16 %v285
        %v752 = vunpack.c.h.b16 %v285
        %v753 = vunpack.c.l.b16 %v286
        %v754 = vunpack.c.h.b16 %v286
        %v755 = vunpack.c.l.b16 %v287
        %v756 = vunpack.c.h.b16 %v287
        %v757 = vunpack.c.l.b16 %v288
        %v758 = vunpack.c.h.b16 %v288
        %v759 = vunpack.c.l.b16 %v289
        %v760 = vunpack.c.h.b16 %v289
        %v761 = vunpack.c.l.b16 %v290
        %v762 = vunpack.c.h.b16 %v290
        %v763 = vunpack.c.l.b16 %v291
        %v764 = vunpack.c.h.b16 %v291
        %v765 = vunpack.c.l.b16 %v292
        %v766 = vunpack.c.h.b16 %v292
        %v767 = vunpack.c.l.b16 %v293
        %v768 = vunpack.c.h.b16 %v293
        %v769 = vunpack.c.l.b16 %v294
        %v770 = vunpack.c.h.b16 %v294
        %v771 = vunpack.c.l.b16 %v295
        %v772 = vunpack.c.h.b16 %v295
        %v773 = vunpack.c.l.b16 %v296
        %v774 = vunpack.c.h.b16 %v296
        %v775 = vunpack.c.l.b16 %v297
        %v776 = vunpack.c.h.b16 %v297
        %v777 = vunpack.c.l.b16 %v298
        %v778 = vunpack.c.h.b16 %v298
        %v779 = vunpack.c.l.b16 %v299
        %v780 = vunpack.c.h.b16 %v299
        %v781 = vunpack.c.l.b16 %v300
        %v782 = vunpack.c.h.b16 %v300
        %v783 = vunpack.c.l.b16 %v301
        %v784 = vunpack.c.h.b16 %v301
        %v785 = vunpack.c.l.b16 %v302
        %v786 = vunpack.c.h.b16 %v302
        %v787 = vunpack.c.l.b16 %v303
        %v788 = vunpack.c.h.b16 %v303
        %v789 = vunpack.c.l.b16 %v304
        %v790 = vunpack.c.h.b16 %v304
        %v791 = vunpack.c.l.b16 %v305
        %v792 = vunpack.c.h.b16 %v305
        %v793 = vunpack.c.l.b16 %v306
        %v794 = vunpack.c.h.b16 %v306
        %v795 = vunpack.c.l.b16 %v307
        %v796 = vunpack.c.h.b16 %v307
        %v797 = vunpack.c.l.b16 %v308
        %v798 = vunpack.c.h.b16 %v308
        %v799 = vunpack.c.l.b16 %v309
        %v800 = vunpack.c.h.b16 %v309
        %v801 = vunpack.c.l.b16 %v310
        %v802 = vunpack.c.h.b16 %v310
        %v803 = vunpack.c.l.b16 %v311
        %v804 = vunpack.c.h.b16 %v311
        %v805 = vunpack.c.l.b16 %v312
        %v806 = vunpack.c.h.b16 %v312
        %v807 = vunpack.c.l.b16 %v313
        %v808 = vunpack.c.h.b16 %v313
        %v809 = vunpack.c.l.b16 %v314
        %v810 = vunpack.c.h.b16 %v314
        %v811 = vunpack.c.l.b16 %v315
        %v812 = vunpack.c.h.b16 %v315
        %v813 = vunpack.c.l.b16 %v316
        %v814 = vunpack.c.h.b16 %v316
        %v815 = vunpack.c.l.b16 %v317
        %v816 = vunpack.c.h.b16 %v317
        %v817 = vunpack.c.l.b16 %v318
        %v818 = vunpack.c.h.b16 %v318
        %v819 = vunpack.c.l.b16 %v319
        %v820 = vunpack.c.h.b16 %v319
        %v821 = vunpack.c.l.b16 %v320
        %v822 = vunpack.c.h.b16 %v320
        %v823 = vunpack.c.l.b16 %v321
        %v824 = vunpack.c.h.b16 %v321
        %v825 = vunpack.c.l.b16 %v322
        %v826 = vunpack.c.h.b16 %v322
        %v827 = vunpack.c.l.b16 %v323
        %v828 = vunpack.c.h.b16 %v323
        %v829 = vunpack.c.l.b16 %v324
        %v830 = vunpack.c.h.b16 %v324
        %v831 = vunpack.c.l.b16 %v325
        %v832 = vunpack.c.h.b16 %v325
        %v833 = vunpack.c.l.b16 %v326
        %v834 = vunpack.c.h.b16 %v326
        %v835 = vunpack.c.l.b16 %v327
        %v836 = vunpack.c.h.b16 %v327
        %v837 = vunpack.c.l.b16 %v328
        %v838 = vunpack.c.h.b16 %v328
        %v839 = vunpack.c.l.b16 %v329
        %v840 = vunpack.c.h.b16 %v329
        %v841 = vunpack.c.l.b16 %v330
        %v842 = vunpack.c.h.b16 %v330
        %v843 = vunpack.c.l.b16 %v331
        %v844 = vunpack.c.h.b16 %v331
        %v845 = vunpack.c.l.b16 %v332
        %v846 = vunpack.c.h.b16 %v332
        %v847 = vunpack.c.l.b16 %v333
        %v848 = vunpack.c.h.b16 %v333
        %v849 = vunpack.c.l.b16 %v334
        %v850 = vunpack.c.h.b16 %v334
        %v851 = vunpack.c.l.b16 %v335
        %v852 = vunpack.c.h.b16 %v335
        %v853 = vunpack.c.l.b16 %v336
        %v854 = vunpack.c.h.b16 %v336
        %v855 = vunpack.c.l.b16 %v337
        %v856 = vunpack.c.h.b16 %v337
        %v857 = vunpack.c.l.b16 %v338
        %v858 = vunpack.c.h.b16 %v338
        %v859 = vunpack.c.l.b16 %v339
        %v860 = vunpack.c.h.b16 %v339
        %v861 = vunpack.c.l.b16 %v340
        %v862 = vunpack.c.h.b16 %v340
        %v863 = vunpack.c.l.b16 %v341
        %v864 = vunpack.c.h.b16 %v341
        %v865 = vunpack.c.l.b16 %v342
        %v866 = vunpack.c.h.b16 %v342
        %v867 = vunpack.c.l.b16 %v343
        %v868 = vunpack.c.h.b16 %v343
        %v869 = vunpack.c.l.b16 %v344
        %v870 = vunpack.c.h.b16 %v344
        %v871 = vunpack.c.l.b16 %v345
        %v872 = vunpack.c.h.b16 %v345
        %v873 = vunpack.c.l.b16 %v346
        %v874 = vunpack.c.h.b16 %v346
        %v875 = vunpack.c.l.b16 %v347
        %v876 = vunpack.c.h.b16 %v347
        %v877 = vunpack.c.l.b16 %v348
        %v878 = vunpack.c.h.b16 %v348
        %v879 = vunpack.c.l.b16 %v349
        %v880 = vunpack.c.h.b16 %v349
        %v881 = vunpack.c.l.b16 %v350
        %v882 = vunpack.c.h.b16 %v350
        %v883 = vunpack.c.l.b16 %v351
        %v884 = vunpack.c.h.b16 %v351
        %v885 = vunpack.c.l.b16 %v352
        %v886 = vunpack.c.h.b16 %v352
        %v887 = vunpack.c.l.b16 %v353
        %v888 = vunpack.c.h.b16 %v353
        %v889 = vunpack.c.l.b16 %v354
        %v890 = vunpack.c.h.b16 %v354
        %v891 = vunpack.c.l.b16 %v355
        %v892 = vunpack.c.h.b16 %v355
        %v893 = vunpack.c.l.b16 %v356
        %v894 = vunpack.c.h.b16 %v356
        %v895 = vunpack.c.l.b16 %v357
        %v896 = vunpack.c.h.b16 %v357
        %v897 = vunpack.c.l.b16 %v358
        %v898 = vunpack.c.h.b16 %v358
        %v899 = vunpack.c.l.b16 %v359
        %v900 = vunpack.c.h.b16 %v359
        %v901 = vunpack.c.l.b16 %v360
        %v902 = vunpack.c.h.b16 %v360
        %v903 = vunpack.c.l.b16 %v361
        %v904 = vunpack.c.h.b16 %v361
        %v905 = vunpack.c.l.b16 %v362
        %v906 = vunpack.c.h.b16 %v362
        %v907 = vunpack.c.l.b16 %v363
        %v908 = vunpack.c.h.b16 %v363
        %v909 = vunpack.c.l.b16 %v364
        %v910 = vunpack.c.h.b16 %v364
        %v911 = vunpack.c.l.b16 %v365
        %v912 = vunpack.c.h.b16 %v365
        %v913 = vunpack.c.l.b16 %v366
        %v914 = vunpack.c.h.b16 %v366
        %v915 = vunpack.c.l.b16 %v367
        %v916 = vunpack.c.h.b16 %v367
        %v917 = vunpack.c.l.b16 %v368
        %v918 = vunpack.c.h.b16 %v368
        %v919 = vunpack.c.l.b16 %v369
        %v920 = vunpack.c.h.b16 %v369
        %v921 = vunpack.c.l.b16 %v370
        %v922 = vunpack.c.h.b16 %v370
        %v923 = vunpack.c.l.b16 %v371
        %v924 = vunpack.c.h.b16 %v371
        %v925 = vunpack.c.l.b16 %v372
        %v926 = vunpack.c.h.b16 %v372
        %v927 = vunpack.c.l.b16 %v373
        %v928 = vunpack.c.h.b16 %v373
        %v929 = vunpack.c.l.b16 %v374
        %v930 = vunpack.c.h.b16 %v374
        %v931 = vunpack.c.l.b16 %v375
        %v932 = vunpack.c.h.b16 %v375
        %v933 = vunpack.c.l.b16 %v376
        %v934 = vunpack.c.h.b16 %v376
        %v935 = vunpack.c.l.b16 %v377
        %v936 = vunpack.c.h.b16 %v377
        %v937 = vunpack.c.l.b16 %v378
        %v938 = vunpack.c.h.b16 %v378
        %v939 = vunpack.c.l.b16 %v379
        %v940 = vunpack.c.h.b16 %v379
        %v941 = vunpack.c.l.b16 %v380
        %v942 = vunpack.c.h.b16 %v380
        %v943 = vunpack.c.l.b16 %v381
        %v944 = vunpack.c.h.b16 %v381
        %v945 = vunpack.c.l.b16 %v382
        %v946 = vunpack.c.h.b16 %v382
        %v947 = vunpack.c.l.b16 %v383
        %v948 = vunpack.c.h.b16 %v383
        %v949 = vunpack.c.l.b16 %v384
        %v950 = vunpack.c.h.b16 %v384
        %v951 = vunpack.c.l.b16 %v385
        %v952 = vunpack.c.h.b16 %v385
        %v953 = vunpack.c.l.b16 %v386
        %v954 = vunpack.c.h.b16 %v386
        %v955 = vunpack.c.l.b16 %v387
        %v956 = vunpack.c.h.b16 %v387
        %v957 = vunpack.c.l.b16 %v388
        %v958 = vunpack.c.h.b16 %v388
        %v959 = vunpack.c.l.b16 %v389
        %v960 = vunpack.c.h.b16 %v389
        %v961 = vunpack.c.l.b16 %v390
        %v962 = vunpack.c.h.b16 %v390
        %v963 = vunpack.c.l.b16 %v391
        %v964 = vunpack.c.h.b16 %v391
        %v965 = vunpack.c.l.b16 %v392
        %v966 = vunpack.c.h.b16 %v392
        %v967 = vunpack.c.l.b16 %v393
        %v968 = vunpack.c.h.b16 %v393
        %v969 = vunpack.c.l.b16 %v394
        %v970 = vunpack.c.h.b16 %v394
        %v971 = vunpack.c.l.b16 %v395
        %v972 = vunpack.c.h.b16 %v395
        %v973 = vunpack.c.l.b16 %v396
        %v974 = vunpack.c.h.b16 %v396
        %v975 = vunpack.c.l.b16 %v397
        %v976 = vunpack.c.h.b16 %v397
        %v977 = vunpack.c.l.b16 %v398
        %v978 = vunpack.c.h.b16 %v398
        %v979 = vunpack.c.l.b16 %v399
        %v980 = vunpack.c.h.b16 %v399
        %v981 = vunpack.c.l.b16 %v400
        %v982 = vunpack.c.h.b16 %v400
        %v983 = vunpack.c.l.b16 %v401
        %v984 = vunpack.c.h.b16 %v401
        %v985 = vunpack.c.l.b16 %v402
        %v986 = vunpack.c.h.b16 %v402
        %v987 = vunpack.c.l.b16 %v403
        %v988 = vunpack.c.h.b16 %v403
        %v989 = vunpack.c.l.b16 %v404
        %v990 = vunpack.c.h.b16 %v404
        %v991 = vunpack.c.l.b16 %v405
        %v992 = vunpack.c.h.b16 %v405
        %v993 = vunpack.c.l.b16 %v406
        %v994 = vunpack.c.h.b16 %v406
        %v995 = vunpack.c.l.b16 %v407
        %v996 = vunpack.c.h.b16 %v407
        %v997 = vunpack.c.l.b16 %v408
        %v998 = vunpack.c.h.b16 %v408
        %v999 = vunpack.c.l.b16 %v409
        %v1000 = vunpack.c.h.b16 %v409
        %v1001 = vunpack.c.l.b16 %v410
        %v1002 = vunpack.c.h.b16 %v410
        %v1003 = vunpack.c.l.b16 %v411
        %v1004 = vunpack.c.h.b16 %v411
        %v1005 = vunpack.c.l.b16 %v412
        %v1006 = vunpack.c.h.b16 %v412
        %v1007 = vunpack.c.l.b16 %v413
        %v1008 = vunpack.c.h.b16 %v413
        %v1009 = vunpack.c.l.b16 %v414
        %v1010 = vunpack.c.h.b16 %v414
        %v1011 = vunpack.c.l.b16 %v415
        %v1012 = vunpack.c.h.b16 %v415
        %v1013 = vpack.c.b16 %v635, %v629
        %v1014 = vpack.c.b16 %v636, %v630
        %v1015 = vpack.c.b16 %v637, %v631
        %v1016 = vpack.c.b16 %v638, %v632
        %v1017 = vpack.c.b16 %v639, %v633
        %v1018 = vpack.c.b16 %v640, %v634
        %v1019 = vpack.c.b16 %v647, %v641
        %v1020 = vpack.c.b16 %v648, %v642
        %v1021 = vpack.c.b16 %v649, %v643
        %v1022 = vpack.c.b16 %v650, %v644
        %v1023 = vpack.c.b16 %v651, %v645
        %v1024 = vpack.c.b16 %v652, %v646
        %v1025 = vpack.c.b16 %v659, %v653
        %v1026 = vpack.c.b16 %v660, %v654
        %v1027 = vpack.c.b16 %v661, %v655
        %v1028 = vpack.c.b16 %v662, %v656
        %v1029 = vpack.c.b16 %v663, %v657
        %v1030 = vpack.c.b16 %v664, %v658
        %v1031 = vpack.c.b16 %v671, %v665
        %v1032 = vpack.c.b16 %v672, %v666
        %v1033 = vpack.c.b16 %v673, %v667
        %v1034 = vpack.c.b16 %v674, %v668
        %v1035 = vpack.c.b16 %v675, %v669
        %v1036 = vpack.c.b16 %v676, %v670
        %v1037 = vpack.c.b16 %v683, %v677
        %v1038 = vpack.c.b16 %v684, %v678
        %v1039 = vpack.c.b16 %v685, %v679
        %v1040 = vpack.c.b16 %v686, %v680
        %v1041 = vpack.c.b16 %v687, %v681
        %v1042 = vpack.c.b16 %v688, %v682
        %v1043 = vpack.c.b16 %v695, %v689
        %v1044 = vpack.c.b16 %v696, %v690
        %v1045 = vpack.c.b16 %v697, %v691
        %v1046 = vpack.c.b16 %v698, %v692
        %v1047 = vpack.c.b16 %v699, %v693
        %v1048 = vpack.c.b16 %v700, %v694
        %v1049 = vpack.c.b16 %v707, %v701
        %v1050 = vpack.c.b16 %v708, %v702
        %v1051 = vpack.c.b16 %v709, %v703
        %v1052 = vpack.c.b16 %v710, %v704
        %v1053 = vpack.c.b16 %v711, %v705
        %v1054 = vpack.c.b16 %v712, %v706
        %v1055 = vpack.c.b16 %v719, %v713
        %v1056 = vpack.c.b16 %v720, %v714
        %v1057 = vpack.c.b16 %v721, %v715
        %v1058 = vpack.c.b16 %v722, %v716
        %v1059 = vpack.c.b16 %v723, %v717
        %v1060 = vpack.c.b16 %v724, %v718
        %v1061 = vpack.c.b16 %v731, %v725
        %v1062 = vpack.c.b16 %v732, %v726
        %v1063 = vpack.c.b16 %v733, %v727
        %v1064 = vpack.c.b16 %v734, %v728
        %v1065 = vpack.c.b16 %v735, %v729
        %v1066 = vpack.c.b16 %v736, %v730
        %v1067 = vpack.c.b16 %v743, %v737
        %v1068 = vpack.c.b16 %v744, %v738
        %v1069 = vpack.c.b16 %v745, %v739
        %v1070 = vpack.c.b16 %v746, %v740
        %v1071 = vpack.c.b16 %v747, %v741
        %v1072 = vpack.c.b16 %v748, %v742
        %v1073 = vpack.c.b16 %v755, %v749
        %v1074 = vpack.c.b16 %v756, %v750
        %v1075 = vpack.c.b16 %v757, %v751
        %v1076 = vpack.c.b16 %v758, %v752
        %v1077 = vpack.c.b16 %v759, %v753
        %v1078 = vpack.c.b16 %v760, %v754
        %v1079 = vpack.c.b16 %v767, %v761
        %v1080 = vpack.c.b16 %v768, %v762
        %v1081 = vpack.c.b16 %v769, %v763
        %v1082 = vpack.c.b16 %v770, %v764
        %v1083 = vpack.c.b16 %v771, %v765
        %v1084 = vpack.c.b16 %v772, %v766
        %v1085 = vpack.c.b16 %v779, %v773
        %v1086 = vpack.c.b16 %v780, %v774
        %v1087 = vpack.c.b16 %v781, %v775
        %v1088 = vpack.c.b16 %v782, %v776
        %v1089 = vpack.c.b16 %v783, %v777
        %v1090 = vpack.c.b16 %v784, %v778
        %v1091 = vpack.c.b16 %v791, %v785
        %v1092 = vpack.c.b16 %v792, %v786
        %v1093 = vpack.c.b16 %v793, %v787
        %v1094 = vpack.c.b16 %v794, %v788
        %v1095 = vpack.c.b16 %v795, %v789
        %v1096 = vpack.c.b16 %v796, %v790
        %v1097 = vpack.c.b16 %v803, %v797
        %v1098 = vpack.c.b16 %v804, %v798
        %v1099 = vpack.c.b16 %v805, %v799
        %v1100 = vpack.c.b16 %v806, %v800
        %v1101 = vpack.c.b16 %v807, %v801
        %v1102 = vpack.c.b16 %v808, %v802
        %v1103 = vpack.c.b16 %v815, %v809
        %v1104 = vpack.c.b16 %v816, %v810
        %v1105 = vpack.c.b16 %v817, %v811
        %v1106 = vpack.c.b16 %v818, %v812
        %v1107 = vpack.c.b16 %v819, %v813
        %v1108 = vpack.c.b16 %v820, %v814
        %v1109 = vpack.c.b16 %v827, %v821
        %v1110 = vpack.c.b16 %v828, %v822
        %v1111 = vpack.c.b16 %v829, %v823
        %v1112 = vpack.c.b16 %v830, %v824
        %v1113 = vpack.c.b16 %v831, %v825
        %v1114 = vpack.c.b16 %v832, %v826
        %v1115 = vpack.c.b16 %v839, %v833
        %v1116 = vpack.c.b16 %v840, %v834
        %v1117 = vpack.c.b16 %v841, %v835
        %v1118 = vpack.c.b16 %v842, %v836
        %v1119 = vpack.c.b16 %v843, %v837
        %v1120 = vpack.c.b16 %v844, %v838
        %v1121 = vpack.c.b16 %v851, %v845
        %v1122 = vpack.c.b16 %v852, %v846
        %v1123 = vpack.c.b16 %v853, %v847
        %v1124 = vpack.c.b16 %v854, %v848
        %v1125 = vpack.c.b16 %v855, %v849
        %v1126 = vpack.c.b16 %v856, %v850
        %v1127 = vpack.c.b16 %v863, %v857
        %v1128 = vpack.c.b16 %v864, %v858
        %v1129 = vpack.c.b16 %v865, %v859
        %v1130 = vpack.c.b16 %v866, %v860
        %v1131 = vpack.c.b16 %v867, %v861
        %v1132 = vpack.c.b16 %v868, %v862
        %v1133 = vpack.c.b16 %v875, %v869
        %v1134 = vpack.c.b16 %v876, %v870
        %v1135 = vpack.c.b16 %v877, %v871
        %v1136 = vpack.c.b16 %v878, %v872
        %v1137 = vpack.c.b16 %v879, %v873
        %v1138 = vpack.c.b16 %v880, %v874
        %v1139 = vpack.c.b16 %v887, %v881
        %v1140 = vpack.c.b16 %v888, %v882
        %v1141 = vpack.c.b16 %v889, %v883
        %v1142 = vpack.c.b16 %v890, %v884
        %v1143 = vpack.c.b16 %v891, %v885
        %v1144 = vpack.c.b16 %v892, %v886
        %v1145 = vpack.c.b16 %v899, %v893
        %v1146 = vpack.c.b16 %v900, %v894
        %v1147 = vpack.c.b16 %v901, %v895
        %v1148 = vpack.c.b16 %v902, %v896
        %v1149 = vpack.c.b16 %v903, %v897
        %v1150 = vpack.c.b16 %v904, %v898
        %v1151 = vpack.c.b16 %v911, %v905
        %v1152 = vpack.c.b16 %v912, %v906
        %v1153 = vpack.c.b16 %v913, %v907
        %v1154 = vpack.c.b16 %v914, %v908
        %v1155 = vpack.c.b16 %v915, %v909
        %v1156 = vpack.c.b16 %v916, %v910
        %v1157 = vpack.c.b16 %v923, %v917
        %v1158 = vpack.c.b16 %v924, %v918
        %v1159 = vpack.c.b16 %v925, %v919
        %v1160 = vpack.c.b16 %v926, %v920
        %v1161 = vpack.c.b16 %v927, %v921
        %v1162 = vpack.c.b16 %v928, %v922
        %v1163 = vpack.c.b16 %v935, %v929
        %v1164 = vpack.c.b16 %v936, %v930
        %v1165 = vpack.c.b16 %v937, %v931
        %v1166 = vpack.c.b16 %v938, %v932
        %v1167 = vpack.c.b16 %v939, %v933
        %v1168 = vpack.c.b16 %v940, %v934
        %v1169 = vpack.c.b16 %v947, %v941
        %v1170 = vpack.c.b16 %v948, %v942
        %v1171 = vpack.c.b16 %v949, %v943
        %v1172 = vpack.c.b16 %v950, %v944
        %v1173 = vpack.c.b16 %v951, %v945
        %v1174 = vpack.c.b16 %v952, %v946
        %v1175 = vpack.c.b16 %v959, %v953
        %v1176 = vpack.c.b16 %v960, %v954
        %v1177 = vpack.c.b16 %v961, %v955
        %v1178 = vpack.c.b16 %v962, %v956
        %v1179 = vpack.c.b16 %v963, %v957
        %v1180 = vpack.c.b16 %v964, %v958
        %v1181 = vpack.c.b16 %v971, %v965
        %v1182 = vpack.c.b16 %v972, %v966
        %v1183 = vpack.c.b16 %v973, %v967
        %v1184 = vpack.c.b16 %v974, %v968
        %v1185 = vpack.c.b16 %v975, %v969
        %v1186 = vpack.c.b16 %v976, %v970
        %v1187 = vpack.c.b16 %v983, %v977
        %v1188 = vpack.c.b16 %v984, %v978
        %v1189 = vpack.c.b16 %v985, %v979
        %v1190 = vpack.c.b16 %v986, %v980
        %v1191 = vpack.c.b16 %v987, %v981
        %v1192 = vpack.c.b16 %v988, %v982
        %v1193 = vpack.c.b16 %v995, %v989
        %v1194 = vpack.c.b16 %v996, %v990
        %v1195 = vpack.c.b16 %v997, %v991
        %v1196 = vpack.c.b16 %v998, %v992
        %v1197 = vpack.c.b16 %v999, %v993
        %v1198 = vpack.c.b16 %v1000, %v994
        %v1199 = vpack.c.b16 %v1007, %v1001
        %v1200 = vpack.c.b16 %v1008, %v1002
        %v1201 = vpack.c.b16 %v1009, %v1003
        %v1202 = vpack.c.b16 %v1010, %v1004
        %v1203 = vpack.c.b16 %v1011, %v1005
        %v1204 = vpack.c.b16 %v1012, %v1006
        %1397 = vmatprep.subr.bf16.mxu0 %v1014
        %1398 = vmatpush1.bf16.xpose.msra.mxu0 %v1013
        %1399 = vmatprep.subr.bf16.mxu0 %v1020
        %1400 = vmatpush1.bf16.xpose.msra.mxu0 %v1019
        %1401 = vmatprep.subr.bf16.mxu0 %v1026
        %1402 = vmatpush1.bf16.xpose.msra.mxu0 %v1025
        %1403 = vmatprep.subr.bf16.mxu0 %v1032
        %1404 = vmatpush1.bf16.xpose.msra.mxu0 %v1031
        %1405 = vmatprep.subr.bf16.mxu0 %v1038
        %1406 = vmatpush1.bf16.xpose.msra.mxu0 %v1037
        %1407 = vmatprep.subr.bf16.mxu0 %v1044
        %1408 = vmatpush1.bf16.xpose.msra.mxu0 %v1043
        %1409 = vmatprep.subr.bf16.mxu0 %v1050
        %1410 = vmatpush1.bf16.xpose.msra.mxu0 %v1049
        %1411 = vmatprep.subr.bf16.mxu0 %v1056
        %1412 = vmatpush1.bf16.xpose.msra.mxu0 %v1055
        %1413 = vmatprep.subr.bf16.mxu0 %v1062
        %1414 = vmatpush1.bf16.xpose.msra.mxu0 %v1061
        %1415 = vmatprep.subr.bf16.mxu0 %v1068
        %1416 = vmatpush1.bf16.xpose.msra.mxu0 %v1067
        %1417 = vmatprep.subr.bf16.mxu0 %v1074
        %1418 = vmatpush1.bf16.xpose.msra.mxu0 %v1073
        %1419 = vmatprep.subr.bf16.mxu0 %v1080
        %1420 = vmatpush1.bf16.xpose.msra.mxu0 %v1079
        %1421 = vmatprep.subr.bf16.mxu0 %v1086
        %1422 = vmatpush1.bf16.xpose.msra.mxu0 %v1085
        %1423 = vmatprep.subr.bf16.mxu0 %v1092
        %1424 = vmatpush1.bf16.xpose.msra.mxu0 %v1091
        %1425 = vmatprep.subr.bf16.mxu0 %v1098
        %1426 = vmatpush1.bf16.xpose.msra.mxu0 %v1097
        %1427 = vmatprep.subr.bf16.mxu0 %v1104
        %1428 = vmatpush1.bf16.xpose.msra.mxu0 %v1103
        %1429 = vmatprep.mubr.bf16.mxu0 %v426
        %1430 = vmatmul.mubr.bf16.gmra.mrb[0].mxu0 %v425
        %v1431 = vpop.f32.mrb[0].mxu0
        %v1432 = vadd.f32 0.0, %v1431
        %v1433 = vpop.f32.mrb[0].mxu0
        %v1434 = vadd.f32 0.0, %v1433
        %v1435 = vpop.f32.mrb[0].mxu0
        %v1436 = vpop.f32.mrb[0].mxu0
        %1437 = vdwg.mxu0
        %1438 = vmatprep.subr.bf16.mxu0 %v1016
        %1439 = vmatpush1.bf16.xpose.msra.mxu0 %v1015
        %1440 = vmatprep.subr.bf16.mxu0 %v1022
        %1441 = vmatpush1.bf16.xpose.msra.mxu0 %v1021
        %1442 = vmatprep.subr.bf16.mxu0 %v1028
        %1443 = vmatpush1.bf16.xpose.msra.mxu0 %v1027
        %1444 = vmatprep.subr.bf16.mxu0 %v1034
        %1445 = vmatpush1.bf16.xpose.msra.mxu0 %v1033
        %1446 = vmatprep.subr.bf16.mxu0 %v1040
        %1447 = vmatpush1.bf16.xpose.msra.mxu0 %v1039
        %1448 = vmatprep.subr.bf16.mxu0 %v1046
        %1449 = vmatpush1.bf16.xpose.msra.mxu0 %v1045
        %1450 = vmatprep.subr.bf16.mxu0 %v1052
        %1451 = vmatpush1.bf16.xpose.msra.mxu0 %v1051
        %1452 = vmatprep.subr.bf16.mxu0 %v1058
        %1453 = vmatpush1.bf16.xpose.msra.mxu0 %v1057
        %1454 = vmatprep.subr.bf16.mxu0 %v1064
        %1455 = vmatpush1.bf16.xpose.msra.mxu0 %v1063
        %1456 = vmatprep.subr.bf16.mxu0 %v1070
        %1457 = vmatpush1.bf16.xpose.msra.mxu0 %v1069
        %1458 = vmatprep.subr.bf16.mxu0 %v1076
        %1459 = vmatpush1.bf16.xpose.msra.mxu0 %v1075
        %1460 = vmatprep.subr.bf16.mxu0 %v1082
        %1461 = vmatpush1.bf16.xpose.msra.mxu0 %v1081
        %1462 = vmatprep.subr.bf16.mxu0 %v1088
        %1463 = vmatpush1.bf16.xpose.msra.mxu0 %v1087
        %1464 = vmatprep.subr.bf16.mxu0 %v1094
        %1465 = vmatpush1.bf16.xpose.msra.mxu0 %v1093
        %1466 = vmatprep.subr.bf16.mxu0 %v1100
        %1467 = vmatpush1.bf16.xpose.msra.mxu0 %v1099
        %1468 = vmatprep.subr.bf16.mxu0 %v1106
        %1469 = vmatpush1.bf16.xpose.msra.mxu0 %v1105
        %1470 = vmatprep.mubr.bf16.mxu0 %v428
        %1471 = vmatmul.mubr.bf16.gmra.mrb[0].mxu0 %v427
        %v1472 = vpop.f32.mrb[0].mxu0
        %v1473 = vadd.f32 %v1432, %v1472
        %v1474 = vpop.f32.mrb[0].mxu0
        %v1475 = vadd.f32 %v1434, %v1474
        %v1476 = vpop.f32.mrb[0].mxu0
        %v1477 = vpop.f32.mrb[0].mxu0
        %1478 = vdwg.mxu0
        %1479 = vmatprep.subr.bf16.mxu0 %v1018
        %1480 = vmatpush1.bf16.xpose.msra.mxu0 %v1017
        %1481 = vmatprep.subr.bf16.mxu0 %v1024
        %1482 = vmatpush1.bf16.xpose.msra.mxu0 %v1023
        %1483 = vmatprep.subr.bf16.mxu0 %v1030
        %1484 = vmatpush1.bf16.xpose.msra.mxu0 %v1029
        %1485 = vmatprep.subr.bf16.mxu0 %v1036
        %1486 = vmatpush1.bf16.xpose.msra.mxu0 %v1035
        %1487 = vmatprep.subr.bf16.mxu0 %v1042
        %1488 = vmatpush1.bf16.xpose.msra.mxu0 %v1041
        %1489 = vmatprep.subr.bf16.mxu0 %v1048
        %1490 = vmatpush1.bf16.xpose.msra.mxu0 %v1047
        %1491 = vmatprep.subr.bf16.mxu0 %v1054
        %1492 = vmatpush1.bf16.xpose.msra.mxu0 %v1053
        %1493 = vmatprep.subr.bf16.mxu0 %v1060
        %1494 = vmatpush1.bf16.xpose.msra.mxu0 %v1059
        %1495 = vmatprep.subr.bf16.mxu0 %v1066
        %1496 = vmatpush1.bf16.xpose.msra.mxu0 %v1065
        %1497 = vmatprep.subr.bf16.mxu0 %v1072
        %1498 = vmatpush1.bf16.xpose.msra.mxu0 %v1071
        %1499 = vmatprep.subr.bf16.mxu0 %v1078
        %1500 = vmatpush1.bf16.xpose.msra.mxu0 %v1077
        %1501 = vmatprep.subr.bf16.mxu0 %v1084
        %1502 = vmatpush1.bf16.xpose.msra.mxu0 %v1083
        %1503 = vmatprep.subr.bf16.mxu0 %v1090
        %1504 = vmatpush1.bf16.xpose.msra.mxu0 %v1089
        %1505 = vmatprep.subr.bf16.mxu0 %v1096
        %1506 = vmatpush1.bf16.xpose.msra.mxu0 %v1095
        %1507 = vmatprep.subr.bf16.mxu0 %v1102
        %1508 = vmatpush1.bf16.xpose.msra.mxu0 %v1101
        %1509 = vmatprep.subr.bf16.mxu0 %v1108
        %1510 = vmatpush1.bf16.xpose.msra.mxu0 %v1107
        %1511 = vmatprep.mubr.bf16.mxu0 %v430
        %1512 = vmatmul.mubr.bf16.gmra.mrb[0].mxu0 %v429
        %v1513 = vpop.f32.mrb[0].mxu0
        %v1514 = vadd.f32 %v1473, %v1513
        %v1515 = vpop.f32.mrb[0].mxu0
        %v1516 = vadd.f32 %v1475, %v1515
        %v1517 = vpop.f32.mrb[0].mxu0
        %v1518 = vpop.f32.mrb[0].mxu0
        %1519 = vdwg.mxu0
        %1520 = vmatprep.subr.bf16.mxu0 %v1110
        %1521 = vmatpush1.bf16.xpose.msra.mxu0 %v1109
        %1522 = vmatprep.subr.bf16.mxu0 %v1116
        %1523 = vmatpush1.bf16.xpose.msra.mxu0 %v1115
        %1524 = vmatprep.subr.bf16.mxu0 %v1122
        %1525 = vmatpush1.bf16.xpose.msra.mxu0 %v1121
        %1526 = vmatprep.subr.bf16.mxu0 %v1128
        %1527 = vmatpush1.bf16.xpose.msra.mxu0 %v1127
        %1528 = vmatprep.subr.bf16.mxu0 %v1134
        %1529 = vmatpush1.bf16.xpose.msra.mxu0 %v1133
        %1530 = vmatprep.subr.bf16.mxu0 %v1140
        %1531 = vmatpush1.bf16.xpose.msra.mxu0 %v1139
        %1532 = vmatprep.subr.bf16.mxu0 %v1146
        %1533 = vmatpush1.bf16.xpose.msra.mxu0 %v1145
        %1534 = vmatprep.subr.bf16.mxu0 %v1152
        %1535 = vmatpush1.bf16.xpose.msra.mxu0 %v1151
        %1536 = vmatprep.subr.bf16.mxu0 %v1158
        %1537 = vmatpush1.bf16.xpose.msra.mxu0 %v1157
        %1538 = vmatprep.subr.bf16.mxu0 %v1164
        %1539 = vmatpush1.bf16.xpose.msra.mxu0 %v1163
        %1540 = vmatprep.subr.bf16.mxu0 %v1170
        %1541 = vmatpush1.bf16.xpose.msra.mxu0 %v1169
        %1542 = vmatprep.subr.bf16.mxu0 %v1176
        %1543 = vmatpush1.bf16.xpose.msra.mxu0 %v1175
        %1544 = vmatprep.subr.bf16.mxu0 %v1182
        %1545 = vmatpush1.bf16.xpose.msra.mxu0 %v1181
        %1546 = vmatprep.subr.bf16.mxu0 %v1188
        %1547 = vmatpush1.bf16.xpose.msra.mxu0 %v1187
        %1548 = vmatprep.subr.bf16.mxu0 %v1194
        %1549 = vmatpush1.bf16.xpose.msra.mxu0 %v1193
        %1550 = vmatprep.subr.bf16.mxu0 %v1200
        %1551 = vmatpush1.bf16.xpose.msra.mxu0 %v1199
        %1552 = vmatprep.mubr.bf16.mxu0 %v426
        %1553 = vmatmul.mubr.bf16.gmra.mrb[0].mxu0 %v425
        %v1554 = vpop.f32.mrb[0].mxu0
        %v1555 = vadd.f32 0.0, %v1554
        %v1556 = vpop.f32.mrb[0].mxu0
        %v1557 = vadd.f32 0.0, %v1556
        %v1558 = vpop.f32.mrb[0].mxu0
        %v1559 = vpop.f32.mrb[0].mxu0
        %1560 = vdwg.mxu0
        %1561 = vmatprep.subr.bf16.mxu0 %v1112
        %1562 = vmatpush1.bf16.xpose.msra.mxu0 %v1111
        %1563 = vmatprep.subr.bf16.mxu0 %v1118
        %1564 = vmatpush1.bf16.xpose.msra.mxu0 %v1117
        %1565 = vmatprep.subr.bf16.mxu0 %v1124
        %1566 = vmatpush1.bf16.xpose.msra.mxu0 %v1123
        %1567 = vmatprep.subr.bf16.mxu0 %v1130
        %1568 = vmatpush1.bf16.xpose.msra.mxu0 %v1129
        %1569 = vmatprep.subr.bf16.mxu0 %v1136
        %1570 = vmatpush1.bf16.xpose.msra.mxu0 %v1135
        %1571 = vmatprep.subr.bf16.mxu0 %v1142
        %1572 = vmatpush1.bf16.xpose.msra.mxu0 %v1141
        %1573 = vmatprep.subr.bf16.mxu0 %v1148
        %1574 = vmatpush1.bf16.xpose.msra.mxu0 %v1147
        %1575 = vmatprep.subr.bf16.mxu0 %v1154
        %1576 = vmatpush1.bf16.xpose.msra.mxu0 %v1153
        %1577 = vmatprep.subr.bf16.mxu0 %v1160
        %1578 = vmatpush1.bf16.xpose.msra.mxu0 %v1159
        %1579 = vmatprep.subr.bf16.mxu0 %v1166
        %1580 = vmatpush1.bf16.xpose.msra.mxu0 %v1165
        %1581 = vmatprep.subr.bf16.mxu0 %v1172
        %1582 = vmatpush1.bf16.xpose.msra.mxu0 %v1171
        %1583 = vmatprep.subr.bf16.mxu0 %v1178
        %1584 = vmatpush1.bf16.xpose.msra.mxu0 %v1177
        %1585 = vmatprep.subr.bf16.mxu0 %v1184
        %1586 = vmatpush1.bf16.xpose.msra.mxu0 %v1183
        %1587 = vmatprep.subr.bf16.mxu0 %v1190
        %1588 = vmatpush1.bf16.xpose.msra.mxu0 %v1189
        %1589 = vmatprep.subr.bf16.mxu0 %v1196
        %1590 = vmatpush1.bf16.xpose.msra.mxu0 %v1195
        %1591 = vmatprep.subr.bf16.mxu0 %v1202
        %1592 = vmatpush1.bf16.xpose.msra.mxu0 %v1201
        %1593 = vmatprep.mubr.bf16.mxu0 %v428
        %1594 = vmatmul.mubr.bf16.gmra.mrb[0].mxu0 %v427
        %v1595 = vpop.f32.mrb[0].mxu0
        %v1596 = vadd.f32 %v1555, %v1595
        %v1597 = vpop.f32.mrb[0].mxu0
        %v1598 = vadd.f32 %v1557, %v1597
        %v1599 = vpop.f32.mrb[0].mxu0
        %v1600 = vpop.f32.mrb[0].mxu0
        %1601 = vdwg.mxu0
        %1602 = vmatprep.subr.bf16.mxu0 %v1114
        %1603 = vmatpush1.bf16.xpose.msra.mxu0 %v1113
        %1604 = vmatprep.subr.bf16.mxu0 %v1120
        %1605 = vmatpush1.bf16.xpose.msra.mxu0 %v1119
        %1606 = vmatprep.subr.bf16.mxu0 %v1126
        %1607 = vmatpush1.bf16.xpose.msra.mxu0 %v1125
        %1608 = vmatprep.subr.bf16.mxu0 %v1132
        %1609 = vmatpush1.bf16.xpose.msra.mxu0 %v1131
        %1610 = vmatprep.subr.bf16.mxu0 %v1138
        %1611 = vmatpush1.bf16.xpose.msra.mxu0 %v1137
        %1612 = vmatprep.subr.bf16.mxu0 %v1144
        %1613 = vmatpush1.bf16.xpose.msra.mxu0 %v1143
        %1614 = vmatprep.subr.bf16.mxu0 %v1150
        %1615 = vmatpush1.bf16.xpose.msra.mxu0 %v1149
        %1616 = vmatprep.subr.bf16.mxu0 %v1156
        %1617 = vmatpush1.bf16.xpose.msra.mxu0 %v1155
        %1618 = vmatprep.subr.bf16.mxu0 %v1162
        %1619 = vmatpush1.bf16.xpose.msra.mxu0 %v1161
        %1620 = vmatprep.subr.bf16.mxu0 %v1168
        %1621 = vmatpush1.bf16.xpose.msra.mxu0 %v1167
        %1622 = vmatprep.subr.bf16.mxu0 %v1174
        %1623 = vmatpush1.bf16.xpose.msra.mxu0 %v1173
        %1624 = vmatprep.subr.bf16.mxu0 %v1180
        %1625 = vmatpush1.bf16.xpose.msra.mxu0 %v1179
        %1626 = vmatprep.subr.bf16.mxu0 %v1186
        %1627 = vmatpush1.bf16.xpose.msra.mxu0 %v1185
        %1628 = vmatprep.subr.bf16.mxu0 %v1192
        %1629 = vmatpush1.bf16.xpose.msra.mxu0 %v1191
        %1630 = vmatprep.subr.bf16.mxu0 %v1198
        %1631 = vmatpush1.bf16.xpose.msra.mxu0 %v1197
        %1632 = vmatprep.subr.bf16.mxu0 %v1204
        %1633 = vmatpush1.bf16.xpose.msra.mxu0 %v1203
        %1634 = vmatprep.mubr.bf16.mxu0 %v430
        %1635 = vmatmul.mubr.bf16.gmra.mrb[0].mxu0 %v429
        %v1636 = vpop.f32.mrb[0].mxu0
        %v1637 = vadd.f32 %v1596, %v1636
        %v1638 = vpop.f32.mrb[0].mxu0
        %v1639 = vadd.f32 %v1598, %v1638
        %v1640 = vpop.f32.mrb[0].mxu0
        %v1641 = vpop.f32.mrb[0].mxu0
        %1642 = vdwg.mxu0
        %v1643 = vld [vmem:[%s218] sm:$0xf]
        %v1645 = vlaneseq
        %v1646 = vshrl.u32 %v1645, 7
        %v1647 = vsub.s32 0, %v1646
        %v1648 = vrot.slane %v1643, %v1647
        %v1649 = vlaneseq
        %v1650 = vshrl.u32 %v1649, 7
        %v1651 = vsub.s32 1, %v1650
        %v1652 = vrot.slane %v1643, %v1651
        %v1653 = vlaneseq
        %v1654 = vshrl.u32 %v1653, 7
        %v1655 = vsub.s32 2, %v1654
        %v1656 = vrot.slane %v1643, %v1655
        %v1657 = vlaneseq
        %v1658 = vshrl.u32 %v1657, 7
        %v1659 = vsub.s32 3, %v1658
        %v1660 = vrot.slane %v1643, %v1659
        %v1665 = vmul.f32 %v1514, %v1648
        %v1666 = vmul.f32 %v1516, %v1652
        %v1667 = vmul.f32 %v1637, %v1656
        %v1668 = vmul.f32 %v1639, %v1660
        %v1669 = vmul.f32 %v1665, %v1665
        %v1670 = vmul.f32 %v1666, %v1666
        %v1671 = vmul.f32 %v1667, %v1667
        %v1672 = vmul.f32 %v1668, %v1668
        %v1673 = vsub.f32 1.0, %v1669
        %v1674 = vsub.f32 1.0, %v1670
        %v1675 = vsub.f32 1.0, %v1671
        %v1676 = vsub.f32 1.0, %v1672
        %v1677 = vmax.f32 %v1673, 0.0
        %v1678 = vmax.f32 %v1674, 0.0
        %v1679 = vmax.f32 %v1675, 0.0
        %v1680 = vmax.f32 %v1676, 0.0
        %v1681 = vmin.f32 %v1677, 1.0
        %v1682 = vmin.f32 %v1678, 1.0
        %v1683 = vmin.f32 %v1679, 1.0
        %v1684 = vmin.f32 %v1680, 1.0
        %v1685 = vrsqrt.pop %v1681
        %v1686 = vmul.f32 %v1681, %v1685
        %vm1687 = vcmp.eq.f32.partialorder %v1681, inf
        %v1688 = vsel %vm1687, %v1681, %v1686
        %vm1689 = vcmp.eq.f32.partialorder %v1681, 0.0
        %v1690 = vand.u32 %v1681, 2147483648
        %v1691 = vsel %vm1689, %v1690, %v1688
        %v1692 = vrsqrt.pop %v1682
        %v1693 = vmul.f32 %v1682, %v1692
        %vm1694 = vcmp.eq.f32.partialorder %v1682, inf
        %v1695 = vsel %vm1694, %v1682, %v1693
        %vm1696 = vcmp.eq.f32.partialorder %v1682, 0.0
        %v1697 = vand.u32 %v1682, 2147483648
        %v1698 = vsel %vm1696, %v1697, %v1695
        %v1699 = vrsqrt.pop %v1683
        %v1700 = vmul.f32 %v1683, %v1699
        %vm1701 = vcmp.eq.f32.partialorder %v1683, inf
        %v1702 = vsel %vm1701, %v1683, %v1700
        %vm1703 = vcmp.eq.f32.partialorder %v1683, 0.0
        %v1704 = vand.u32 %v1683, 2147483648
        %v1705 = vsel %vm1703, %v1704, %v1702
        %v1706 = vrsqrt.pop %v1684
        %v1707 = vmul.f32 %v1684, %v1706
        %vm1708 = vcmp.eq.f32.partialorder %v1684, inf
        %v1709 = vsel %vm1708, %v1684, %v1707
        %vm1710 = vcmp.eq.f32.partialorder %v1684, 0.0
        %v1711 = vand.u32 %v1684, 2147483648
        %v1712 = vsel %vm1710, %v1711, %v1709
        %v1713 = vmul.f32 %v1665, 0.87758255
        %v1714 = vmul.f32 %v1666, 0.87758255
        %v1715 = vmul.f32 %v1667, 0.87758255
        %v1716 = vmul.f32 %v1668, 0.87758255
        %v1717 = vmul.f32 %v1691, 0.47942555
        %v1718 = vmul.f32 %v1698, 0.47942555
        %v1719 = vmul.f32 %v1705, 0.47942555
        %v1720 = vmul.f32 %v1712, 0.47942555
        %v1721 = vsub.f32 %v1713, %v1717
        %v1722 = vsub.f32 %v1714, %v1718
        %v1723 = vsub.f32 %v1715, %v1719
        %v1724 = vsub.f32 %v1716, %v1720
        %vm1725 = vcmp.gt.f32.partialorder %v1665, -0.87758255
        %vm1726 = vcmp.gt.f32.partialorder %v1666, -0.87758255
        %vm1727 = vcmp.gt.f32.partialorder %v1667, -0.87758255
        %vm1728 = vcmp.gt.f32.partialorder %v1668, -0.87758255
        %v1729 = vsub.f32 %v1665, 0.23971277
        %v1730 = vsub.f32 %v1666, 0.23971277
        %v1731 = vsub.f32 %v1667, 0.23971277
        %v1732 = vsub.f32 %v1668, 0.23971277
        %v1733 = vsel %vm1725, %v1721, %v1729
        %v1734 = vsel %vm1726, %v1722, %v1730
        %v1735 = vsel %vm1727, %v1723, %v1731
        %v1736 = vsel %vm1728, %v1724, %v1732
        %v1737 = vlaneseq
        %v1738 = vand.u32 %v1737, 127
        %v1739 = vadd.s32 %v1738, 128
        %v1740 = vadd.s32 %v1738, 256
        %v1741 = vadd.s32 %v1738, 384
        %s1742 = smul.u32 %s18, 512
        %v1743 = vstv %s1742
        %v1744 = vadd.s32 %v1738, %v1743
        %v1745 = vadd.s32 %v1739, %v1743
        %v1746 = vadd.s32 %v1740, %v1743
        %v1747 = vadd.s32 %v1741, %v1743
        %v1748 = vld [vmem:[%s3] sm:$0xff]
        %1749 = vset.pattern.permute.xlu0 0
        %1750 = vperm.xlu0 %1749, %v1748
        %v1751 = vpop.permute.xlu0 %1750
        %vm1752 = vcmp.eq.s32.totalorder %v1744, %v1751
        %vm1753 = vcmp.eq.s32.totalorder %v1745, %v1751
        %vm1754 = vcmp.eq.s32.totalorder %v1746, %v1751
        %vm1755 = vcmp.eq.s32.totalorder %v1747, %v1751
        %v1756 = vsel %vm1752, %v1733, %v1665
        %v1757 = vsel %vm1753, %v1734, %v1666
        %v1758 = vsel %vm1754, %v1735, %v1667
        %v1759 = vsel %vm1755, %v1736, %v1668
        %v1760 = vmul.f32 %v1756, 30.0
        %v1761 = vmul.f32 %v1757, 30.0
        %v1762 = vmul.f32 %v1758, 30.0
        %v1763 = vmul.f32 %v1759, 30.0
        %1764 = vst [vmem:[%s207] sm:$0xff] %v1760
        %1765 = vst [vmem:[%s207 + $0x8] sm:$0xff] %v1761
        %1766 = vst [vmem:[%s207 + $0x10] sm:$0xff] %v1762
        %1767 = vst [vmem:[%s207 + $0x18] sm:$0xff] %v1763
        %s1768 = sand.u32 %s120, 1
        %s1769 = scalar_lea.sflag [#allocation3], %s1768
        %s1770 = sand.u32 %s120, 1
        %s1771 = smul.addr %s1770, 32
        %s1772 = scalar_lea.vmem [#allocation2], %s1771
        // Predicated region
        $region37: #{model_forward.1} parent=35 // pred_check
          %p1773 = pneg %p130
        $region38: #{model_forward.1} parent=35 // pred_check_branch
          %1775 = sbr.rel (%p1773) target = $region40
        $region39: #{model_forward.1} parent=35 // pred_region
          %s1776 = smul.u32 4, %s18
          %s1778 = ssub.s32 512, 512
          %1779 = vsyncadd %s1769, %s1778
          %s1780 = smul.addr %s1776, 128
          %s1781 = scalar_lea.hbm %s4, %s1780
          %s1783 = sshll.u32 %s1772, 4
          %s1784 = int_to_ptr.vmem [resolvable:$true] %s1783
          %1786 = dma.vmem_to_hbm [thread:$0]  %s1784, 512, %s1781, %s1769
        $region40: #{model_forward.1} parent=35 // pred_fallthru
          _
      $region36: #{model_forward.1} parent=5 // pred_fallthru
        _
      %p1787 = scmp.le.s32.totalorder 2, %s13
      // Predicated region
      $region41: #{model_forward.1} parent=5 // pred_check
        %p1788 = pneg %p1787
      $region42: #{model_forward.1} parent=5 // pred_check_branch
        %1790 = sbr.rel (%p1788) target = $region44
      $region43: #{model_forward.1} parent=5 // pred_region
        %s1791 = ssub.s32 %s13, 2
        // Predicated region
        $region45: #{model_forward.1} parent=43 // pred_check
          %p1792 = pneg %p136
        $region46: #{model_forward.1} parent=43 // pred_check_branch
          %1794 = sbr.rel (%p1792) target = $region48
        $region47: #{model_forward.1} parent=43 // pred_region
          %s1795 = sand.u32 %s121, 1
          %s1796 = scalar_lea.sflag [#allocation3], %s1795
          %s1797 = sand.u32 %s121, 1
          %s1798 = smul.addr %s1797, 32
          %s1799 = scalar_lea.vmem [#allocation2], %s1798
          %1800 = dma.done %s1796, 512
        $region48: #{model_forward.1} parent=43 // pred_fallthru
          _
      $region44: #{model_forward.1} parent=5 // pred_fallthru
        _
    $region6: #{model_forward.1} parent=1 // loop_footer
      %s17 = sadd.s32 1, %s13
    $region7: #{model_forward.1} parent=1 // loop_footer_branch
      %12 = sbr.rel target = $region3
    $region8: #{model_forward.1} parent=1 // loop_exit
      _
    %1801 = vsyncpa [#allocation3], 1
    %s1802 = scalar_lea.sflag [#allocation3], 1
    %1803 = vsyncpa %s1802, 1

</llo_original>
